<compile_context>
chip_gen: v7x
topology: tpu7x:2x2x1
jax: 0.10.0
libtpu: 0.0.40
codegen_flags: <defaults>
</compile_context>

<pallas_src>
import jax
import jax.numpy as jnp
from jax.experimental import pallas as pl
from jax.experimental.pallas import tpu as pltpu

# Small, self-consistent BERT-ish config.
B = 2            # batch
S = 8            # sequence length
H = 32           # hidden size
NH = 2           # attention heads
HD = H // NH     # head dim
FF = 64          # true intermediate size
FF_PAD = 128     # lane-dense padded intermediate size
QKV_PAD = 128    # lane-dense fused Q|K|V width (3H = 96 -> 128)
C = 6            # num_classes
C_PAD = 128      # lane-dense classifier output width (sliced back to C outside)
VOCAB = 100
LAYERS = 2
LN_EPS = 1e-12


def _layer_norm(x, gamma, beta):
    mu = jnp.mean(x, axis=-1, keepdims=True)
    var = jnp.mean(jnp.square(x - mu), axis=-1, keepdims=True)
    return (x - mu) * jax.lax.rsqrt(var + LN_EPS) * gamma + beta


# --------------------------------------------------------------------------- #
# Fused kernel: embedding LN + LAYERS encoder layers + pooler + classifier.    #
# Single gridless invocation; layers statically unrolled inside the kernel.    #
# --------------------------------------------------------------------------- #
def fused_bert_kernel(x_emb_ref, emb_ln_ref, neg_bias_ref,
                      w_qkv_ref, b_qkv_ref, w_o_ref, vec_ref,
                      w_ff1_ref, b_ff1_ref, w_ff2_ref,
                      wp_ref, bp_ref, wc_ref, bc_ref,
                      out_ref):
    # Embedding LayerNorm on the flattened [B*S, H] activation slab (f32).
    x = _layer_norm(x_emb_ref[...].reshape(B * S, H),
                    emb_ln_ref[0:1, :], emb_ln_ref[1:2, :])

    neg_bias = neg_bias_ref[...]                       # [B, 1, S] f32 (precomputed)
    scale = jnp.float32(1.0 / (HD ** 0.5))

    for l in range(LAYERS):                            # static unrolled layer loop
        x_bf = x.astype(jnp.bfloat16)

        # ---- Fused QKV: one lane-dense [H,128] bf16 matmul, f32 accumulate.
        qkv = jnp.dot(x_bf, w_qkv_ref[l],
                      preferred_element_type=jnp.float32) + b_qkv_ref[l]
        qkv3 = qkv.astype(jnp.bfloat16).reshape(B, S, QKV_PAD)   # single bf16 cast

        vec = vec_ref[l]                               # [6, H] f32 packed vectors
        bo, ln1g, ln1b = vec[0:1], vec[1:2], vec[2:3]
        ln2g, ln2b, bff2 = vec[3:4], vec[4:5], vec[5:6]
        wo_l = w_o_ref[l]                              # [NH, HD, H] bf16 (head-major)

        # ---- Multi-head self-attention; output projection folded per head.
        attn_acc = jnp.zeros((B * S, H), jnp.float32)
        for h in range(NH):                            # static head loop
            qh = qkv3[:, :, h * HD:(h + 1) * HD]               # [B, S, HD] bf16
            kh = qkv3[:, :, H + h * HD:H + (h + 1) * HD]
            vh = qkv3[:, :, 2 * H + h * HD:2 * H + (h + 1) * HD]

            s = jnp.einsum('bqd,bkd->bqk', qh, kh,
                           preferred_element_type=jnp.float32) * scale + neg_bias
            s = s - jnp.max(s, axis=-1, keepdims=True)
            p = jnp.exp(s)
            p = p * pl.reciprocal(jnp.sum(p, axis=-1, keepdims=True), approx=True)

            ctx = jnp.einsum('bqk,bkd->bqd', p.astype(jnp.bfloat16), vh,
                             preferred_element_type=jnp.float32)    # [B, S, HD]
            attn_acc = attn_acc + jnp.dot(
                ctx.reshape(B * S, HD).astype(jnp.bfloat16), wo_l[h],
                preferred_element_type=jnp.float32)

        h1 = _layer_norm(x + attn_acc + bo, ln1g, ln1b)            # [B*S, H] f32

        # ---- Feed-forward (lane-dense 128-wide intermediate).
        ff = jnp.dot(h1.astype(jnp.bfloat16), w_ff1_ref[l],
                     preferred_element_type=jnp.float32) + b_ff1_ref[l]
        ff = jax.nn.gelu(ff, approximate=True)
        ff2 = jnp.dot(ff.astype(jnp.bfloat16), w_ff2_ref[l],
                      preferred_element_type=jnp.float32) + bff2

        x = _layer_norm(h1 + ff2, ln2g, ln2b)

    # ---- Pooler (tanh dense on [CLS]) + dropout(identity) + classifier + sigmoid.
    cls = x.reshape(B, S, H)[:, 0, :]                              # [B, H]
    pooled = jnp.tanh(jnp.dot(cls.astype(jnp.bfloat16), wp_ref[...],
                              preferred_element_type=jnp.float32) + bp_ref[...])
    logits = jnp.dot(pooled.astype(jnp.bfloat16), wc_ref[...],
                     preferred_element_type=jnp.float32) + bc_ref[...]
    out_ref[...] = jax.nn.sigmoid(logits)                          # lane-dense [B, 128]


def bert_classifier_forward(params, token_ids, attn_mask):
    # Embedding gather glue (plain JAX); LayerNorm happens inside the kernel.
    we = params['word_emb'][token_ids]                 # [B, S, H]
    pe = params['pos_emb'][None, :, :]                 # [1, S, H]
    te = params['type_emb'][0][None, None, :]          # token_type_ids=None -> type 0
    x_emb = (we + pe + te).astype(jnp.float32)

    # Additive attention bias computed ONCE per call in the wrapper.
    neg_bias = (1.0 - attn_mask.astype(jnp.float32))[:, None, :] * jnp.float32(-10000.0)

    ins = (x_emb, params['emb_ln'], neg_bias,
           params['w_qkv'], params['b_qkv'], params['w_o'], params['vec'],
           params['w_ff1'], params['b_ff1'], params['w_ff2'],
           params['wp'], params['bp'], params['wc'], params['bc'])

    probs_padded = pl.pallas_call(
        fused_bert_kernel,
        out_shape=jax.ShapeDtypeStruct((B, C_PAD), jnp.float32),
        in_specs=[pl.BlockSpec(memory_space=pltpu.MemorySpace.VMEM)] * len(ins),
        out_specs=pl.BlockSpec(memory_space=pltpu.MemorySpace.VMEM),
        # No grid: single kernel invocation, everything resident in VMEM.
        # (Scaling path: add a 'parallel' B*S-tile axis for v7x dual-TC and a
        #  layer-streaming 'arbitrary' axis once LAYERS*weights exceed VMEM.)
    )(*ins)
    return probs_padded[:, :C]


# --------------------------------------------------------------------------- #
# Parameter setup (deterministic synthetic weights, packed for the kernel).    #
# --------------------------------------------------------------------------- #
def init_params(key):
    std = 0.02
    keys = iter(jax.random.split(key, 16))

    def nrm(shape):
        return (std * jax.random.normal(next(keys), shape)).astype(jnp.float32)

    # Fused QKV weight: [L, H, 128] = [Wq | Wk | Wv | 0-pad], bf16 MXU inputs.
    wq, wk, wv = nrm((LAYERS, H, H)), nrm((LAYERS, H, H)), nrm((LAYERS, H, H))
    w_qkv = jnp.zeros((LAYERS, H, QKV_PAD), jnp.float32)
    w_qkv = w_qkv.at[:, :, 0:H].set(wq).at[:, :, H:2 * H].set(wk)
    w_qkv = w_qkv.at[:, :, 2 * H:3 * H].set(wv).astype(jnp.bfloat16)
    b_qkv = jnp.zeros((LAYERS, 1, QKV_PAD), jnp.float32)     # [bq | bk | bv | 0]

    # Attention output projection, split head-major at init (free): [L, NH, HD, H].
    w_o = nrm((LAYERS, H, H)).reshape(LAYERS, NH, HD, H).astype(jnp.bfloat16)

    # FFN weights, lane-padded to 128.
    w_ff1 = jnp.zeros((LAYERS, H, FF_PAD), jnp.float32)
    w_ff1 = w_ff1.at[:, :, :FF].set(nrm((LAYERS, H, FF))).astype(jnp.bfloat16)
    b_ff1 = jnp.zeros((LAYERS, 1, FF_PAD), jnp.float32)
    w_ff2 = jnp.zeros((LAYERS, FF_PAD, H), jnp.float32)
    w_ff2 = w_ff2.at[:, :FF, :].set(nrm((LAYERS, FF, H))).astype(jnp.bfloat16)

    # vec rows: bo, ln1_g, ln1_b, ln2_g, ln2_b, b_ff2
    vec = jnp.zeros((LAYERS, 6, H), jnp.float32)
    vec = vec.at[:, 1, :].set(1.0)   # ln1 gamma
    vec = vec.at[:, 3, :].set(1.0)   # ln2 gamma

    # Classifier, lane-padded to 128 (sliced to C outside the kernel).
    wc = jnp.zeros((H, C_PAD), jnp.float32).at[:, :C].set(nrm((H, C)))
    wc = wc.astype(jnp.bfloat16)
    bc = jnp.zeros((1, C_PAD), jnp.float32)

    return {
        'word_emb': nrm((VOCAB, H)),
        'pos_emb': nrm((S, H)),
        'type_emb': nrm((2, H)),
        'emb_ln': jnp.stack([jnp.ones((H,), jnp.float32),
                             jnp.zeros((H,), jnp.float32)]),          # [2, H]
        'w_qkv': w_qkv, 'b_qkv': b_qkv, 'w_o': w_o, 'vec': vec,
        'w_ff1': w_ff1, 'b_ff1': b_ff1, 'w_ff2': w_ff2,
        'wp': nrm((H, H)).astype(jnp.bfloat16),                       # pooler W (bf16)
        'bp': jnp.zeros((1, H), jnp.float32),
        'wc': wc, 'bc': bc,
    }


if __name__ == "__main__":
    key = jax.random.PRNGKey(0)
    pkey, ikey = jax.random.split(key)
    params = init_params(pkey)

    token_ids = jax.random.randint(ikey, (B, S), 0, VOCAB, dtype=jnp.int32)
    attn_mask = jnp.array([[1, 1, 1, 1, 1, 1, 1, 1],
                           [1, 1, 1, 1, 1, 0, 0, 0]], dtype=jnp.int32)

    fwd = jax.jit(bert_classifier_forward)
    out = fwd(params, token_ids, attn_mask)
    out = jax.block_until_ready(out)

    assert out.shape == (B, C), out.shape
    assert bool(jnp.all(jnp.isfinite(out)))
    assert bool(jnp.all((out >= 0.0) & (out <= 1.0)))
    print("KERNEL_OK")
</pallas_src>

<mosaic_0001>
module attributes {stable_mosaic.version = 11 : i64} {
  func.func @fused_bert_kernel(%arg0: memref<2x8x32xf32, #tpu.memory_space<vmem>>, %arg1: memref<2x32xf32, #tpu.memory_space<vmem>>, %arg2: memref<2x1x8xf32, #tpu.memory_space<vmem>>, %arg3: memref<2x32x128xbf16, #tpu.memory_space<vmem>>, %arg4: memref<2x1x128xf32, #tpu.memory_space<vmem>>, %arg5: memref<2x2x16x32xbf16, #tpu.memory_space<vmem>>, %arg6: memref<2x6x32xf32, #tpu.memory_space<vmem>>, %arg7: memref<2x32x128xbf16, #tpu.memory_space<vmem>>, %arg8: memref<2x1x128xf32, #tpu.memory_space<vmem>>, %arg9: memref<2x128x32xbf16, #tpu.memory_space<vmem>>, %arg10: memref<32x32xbf16, #tpu.memory_space<vmem>>, %arg11: memref<1x32xf32, #tpu.memory_space<vmem>>, %arg12: memref<32x128xbf16, #tpu.memory_space<vmem>>, %arg13: memref<1x128xf32, #tpu.memory_space<vmem>>, %arg14: memref<2x128xf32, #tpu.memory_space<vmem>>) attributes {dimension_semantics = [], scalar_prefetch = 0 : i64, scratch_operands = 0 : i64, tpu.core_type = #tpu.core_type<tc>} {
    %c0 = arith.constant 0 : index
    %c0_0 = arith.constant 0 : index
    %c0_1 = arith.constant 0 : index
    %0 = vector.load %arg0[%c0, %c0_0, %c0_1] : memref<2x8x32xf32, #tpu.memory_space<vmem>>, vector<2x8x32xf32>
    %1 = vector.shape_cast %0 : vector<2x8x32xf32> to vector<16x32xf32>
    %c0_2 = arith.constant 0 : index
    %c0_3 = arith.constant 0 : index
    %2 = vector.load %arg1[%c0_2, %c0_3] : memref<2x32xf32, #tpu.memory_space<vmem>>, vector<1x32xf32>
    %c1 = arith.constant 1 : index
    %c0_4 = arith.constant 0 : index
    %3 = vector.load %arg1[%c1, %c0_4] : memref<2x32xf32, #tpu.memory_space<vmem>>, vector<1x32xf32>
    %cst = arith.constant dense<0.000000e+00> : vector<16xf32>
    %4 = vector.multi_reduction <add>, %1, %cst [1] : vector<16x32xf32> to vector<16xf32>
    %5 = vector.shape_cast %4 : vector<16xf32> to vector<16x1xf32>
    %cst_5 = arith.constant 3.200000e+01 : f32
    %6 = vector.broadcast %cst_5 : f32 to vector<16x1xf32>
    %7 = arith.divf %5, %6 : vector<16x1xf32>
    %8 = vector.broadcast %7 : vector<16x1xf32> to vector<16x32xf32>
    %9 = arith.subf %1, %8 : vector<16x32xf32>
    %10 = arith.mulf %9, %9 : vector<16x32xf32>
    %cst_6 = arith.constant dense<0.000000e+00> : vector<16xf32>
    %11 = vector.multi_reduction <add>, %10, %cst_6 [1] : vector<16x32xf32> to vector<16xf32>
    %12 = vector.shape_cast %11 : vector<16xf32> to vector<16x1xf32>
    %cst_7 = arith.constant 3.200000e+01 : f32
    %13 = vector.broadcast %cst_7 : f32 to vector<16x1xf32>
    %14 = arith.divf %12, %13 : vector<16x1xf32>
    %15 = vector.broadcast %7 : vector<16x1xf32> to vector<16x32xf32>
    %16 = arith.subf %1, %15 : vector<16x32xf32>
    %cst_8 = arith.constant 9.99999996E-13 : f32
    %17 = vector.broadcast %cst_8 : f32 to vector<16x1xf32>
    %18 = arith.addf %14, %17 : vector<16x1xf32>
    %19 = math.rsqrt %18 : vector<16x1xf32>
    %20 = vector.broadcast %19 : vector<16x1xf32> to vector<16x32xf32>
    %21 = arith.mulf %16, %20 : vector<16x32xf32>
    %22 = vector.broadcast %2 : vector<1x32xf32> to vector<16x32xf32>
    %23 = arith.mulf %21, %22 : vector<16x32xf32>
    %24 = vector.broadcast %3 : vector<1x32xf32> to vector<16x32xf32>
    %25 = arith.addf %23, %24 : vector<16x32xf32>
    %c0_9 = arith.constant 0 : index
    %c0_10 = arith.constant 0 : index
    %c0_11 = arith.constant 0 : index
    %26 = vector.load %arg2[%c0_9, %c0_10, %c0_11] : memref<2x1x8xf32, #tpu.memory_space<vmem>>, vector<2x1x8xf32>
    %27 = arith.truncf %25 : vector<16x32xf32> to vector<16x32xbf16>
    %c0_12 = arith.constant 0 : index
    %c0_13 = arith.constant 0 : index
    %c0_14 = arith.constant 0 : index
    %28 = vector.load %arg3[%c0_12, %c0_13, %c0_14] : memref<2x32x128xbf16, #tpu.memory_space<vmem>>, vector<1x32x128xbf16>
    %29 = vector.shape_cast %28 : vector<1x32x128xbf16> to vector<32x128xbf16>
    %cst_15 = arith.constant dense<0.000000e+00> : vector<16x128xf32>
    %30 = tpu.matmul %27, %29, %cst_15 {dimension_numbers = #tpu.dot_dimension_numbers<[1], [0], [0], [1], [0, 0, 1, 1], [], []>} : vector<16x32xbf16>, vector<32x128xbf16>, vector<16x128xf32> -> vector<16x128xf32>
    %c0_16 = arith.constant 0 : index
    %c0_17 = arith.constant 0 : index
    %c0_18 = arith.constant 0 : index
    %31 = vector.load %arg4[%c0_16, %c0_17, %c0_18] : memref<2x1x128xf32, #tpu.memory_space<vmem>>, vector<1x1x128xf32>
    %32 = vector.shape_cast %31 : vector<1x1x128xf32> to vector<1x128xf32>
    %33 = vector.broadcast %32 : vector<1x128xf32> to vector<16x128xf32>
    %34 = arith.addf %30, %33 : vector<16x128xf32>
    %35 = arith.truncf %34 : vector<16x128xf32> to vector<16x128xbf16>
    %36 = vector.shape_cast %35 : vector<16x128xbf16> to vector<2x8x128xbf16>
    %c0_19 = arith.constant 0 : index
    %c0_20 = arith.constant 0 : index
    %c0_21 = arith.constant 0 : index
    %37 = vector.load %arg6[%c0_19, %c0_20, %c0_21] : memref<2x6x32xf32, #tpu.memory_space<vmem>>, vector<1x6x32xf32>
    %38 = vector.shape_cast %37 : vector<1x6x32xf32> to vector<6x32xf32>
    %39 = vector.extract_strided_slice %38 {offsets = [0, 0], sizes = [1, 32], strides = [1, 1]} : vector<6x32xf32> to vector<1x32xf32>
    %40 = vector.extract_strided_slice %38 {offsets = [1, 0], sizes = [1, 32], strides = [1, 1]} : vector<6x32xf32> to vector<1x32xf32>
    %41 = vector.extract_strided_slice %38 {offsets = [2, 0], sizes = [1, 32], strides = [1, 1]} : vector<6x32xf32> to vector<1x32xf32>
    %42 = vector.extract_strided_slice %38 {offsets = [3, 0], sizes = [1, 32], strides = [1, 1]} : vector<6x32xf32> to vector<1x32xf32>
    %43 = vector.extract_strided_slice %38 {offsets = [4, 0], sizes = [1, 32], strides = [1, 1]} : vector<6x32xf32> to vector<1x32xf32>
    %44 = vector.extract_strided_slice %38 {offsets = [5, 0], sizes = [1, 32], strides = [1, 1]} : vector<6x32xf32> to vector<1x32xf32>
    %c0_22 = arith.constant 0 : index
    %c0_23 = arith.constant 0 : index
    %c0_24 = arith.constant 0 : index
    %c0_25 = arith.constant 0 : index
    %45 = vector.load %arg5[%c0_22, %c0_23, %c0_24, %c0_25] : memref<2x2x16x32xbf16, #tpu.memory_space<vmem>>, vector<1x2x16x32xbf16>
    %46 = vector.shape_cast %45 : vector<1x2x16x32xbf16> to vector<2x16x32xbf16>
    %cst_26 = arith.constant 0.000000e+00 : f32
    %47 = vector.broadcast %cst_26 : f32 to vector<16x32xf32>
    %48 = vector.extract_strided_slice %36 {offsets = [0, 0, 0], sizes = [2, 8, 16], strides = [1, 1, 1]} : vector<2x8x128xbf16> to vector<2x8x16xbf16>
    %49 = vector.extract_strided_slice %36 {offsets = [0, 0, 32], sizes = [2, 8, 16], strides = [1, 1, 1]} : vector<2x8x128xbf16> to vector<2x8x16xbf16>
    %50 = vector.extract_strided_slice %36 {offsets = [0, 0, 64], sizes = [2, 8, 16], strides = [1, 1, 1]} : vector<2x8x128xbf16> to vector<2x8x16xbf16>
    "tpu.trace_start"() <{level = 10 : i32, message = "bqd,bkd->bqk"}> : () -> ()
    %cst_27 = arith.constant dense<0.000000e+00> : vector<2x8x8xf32>
    %51 = tpu.matmul %48, %49, %cst_27 {dimension_numbers = #tpu.dot_dimension_numbers<[2], [2], [1], [1], [0, 0, 0, 1, 1, 1], [0], [0]>} : vector<2x8x16xbf16>, vector<2x8x16xbf16>, vector<2x8x8xf32> -> vector<2x8x8xf32>
    "tpu.trace_stop"() : () -> ()
    %cst_28 = arith.constant 2.500000e-01 : f32
    %52 = vector.broadcast %cst_28 : f32 to vector<2x8x8xf32>
    %53 = arith.mulf %51, %52 : vector<2x8x8xf32>
    %54 = vector.broadcast %26 : vector<2x1x8xf32> to vector<2x8x8xf32>
    %55 = arith.addf %53, %54 : vector<2x8x8xf32>
    %cst_29 = arith.constant dense<0xFF800000> : vector<2x8xf32>
    %56 = vector.multi_reduction <maximumf>, %55, %cst_29 [2] : vector<2x8x8xf32> to vector<2x8xf32>
    %57 = vector.shape_cast %56 : vector<2x8xf32> to vector<2x8x1xf32>
    %58 = vector.broadcast %57 : vector<2x8x1xf32> to vector<2x8x8xf32>
    %59 = arith.subf %55, %58 : vector<2x8x8xf32>
    %60 = math.exp %59 : vector<2x8x8xf32>
    %cst_30 = arith.constant dense<0.000000e+00> : vector<2x8xf32>
    %61 = vector.multi_reduction <add>, %60, %cst_30 [2] : vector<2x8x8xf32> to vector<2x8xf32>
    %62 = vector.shape_cast %61 : vector<2x8xf32> to vector<2x8x1xf32>
    %63 = tpu.reciprocal %62 {approx = true} : vector<2x8x1xf32> -> vector<2x8x1xf32>
    %64 = vector.broadcast %63 : vector<2x8x1xf32> to vector<2x8x8xf32>
    %65 = arith.mulf %60, %64 : vector<2x8x8xf32>
    %66 = arith.truncf %65 : vector<2x8x8xf32> to vector<2x8x8xbf16>
    "tpu.trace_start"() <{level = 10 : i32, message = "bqk,bkd->bqd"}> : () -> ()
    %cst_31 = arith.constant dense<0.000000e+00> : vector<2x8x16xf32>
    %67 = tpu.matmul %66, %50, %cst_31 {dimension_numbers = #tpu.dot_dimension_numbers<[2], [1], [1], [2], [0, 0, 0, 1, 1, 2], [0], [0]>} : vector<2x8x8xbf16>, vector<2x8x16xbf16>, vector<2x8x16xf32> -> vector<2x8x16xf32>
    "tpu.trace_stop"() : () -> ()
    %68 = vector.shape_cast %67 : vector<2x8x16xf32> to vector<16x16xf32>
    %69 = arith.truncf %68 : vector<16x16xf32> to vector<16x16xbf16>
    %70 = vector.extract_strided_slice %46 {offsets = [0, 0, 0], sizes = [1, 16, 32], strides = [1, 1, 1]} : vector<2x16x32xbf16> to vector<1x16x32xbf16>
    %71 = vector.shape_cast %70 : vector<1x16x32xbf16> to vector<16x32xbf16>
    %cst_32 = arith.constant dense<0.000000e+00> : vector<16x32xf32>
    %72 = tpu.matmul %69, %71, %cst_32 {dimension_numbers = #tpu.dot_dimension_numbers<[1], [0], [0], [1], [0, 0, 1, 1], [], []>} : vector<16x16xbf16>, vector<16x32xbf16>, vector<16x32xf32> -> vector<16x32xf32>
    %73 = arith.addf %47, %72 : vector<16x32xf32>
    %74 = vector.extract_strided_slice %36 {offsets = [0, 0, 16], sizes = [2, 8, 16], strides = [1, 1, 1]} : vector<2x8x128xbf16> to vector<2x8x16xbf16>
    %75 = vector.extract_strided_slice %36 {offsets = [0, 0, 48], sizes = [2, 8, 16], strides = [1, 1, 1]} : vector<2x8x128xbf16> to vector<2x8x16xbf16>
    %76 = vector.extract_strided_slice %36 {offsets = [0, 0, 80], sizes = [2, 8, 16], strides = [1, 1, 1]} : vector<2x8x128xbf16> to vector<2x8x16xbf16>
    "tpu.trace_start"() <{level = 10 : i32, message = "bqd,bkd->bqk"}> : () -> ()
    %cst_33 = arith.constant dense<0.000000e+00> : vector<2x8x8xf32>
    %77 = tpu.matmul %74, %75, %cst_33 {dimension_numbers = #tpu.dot_dimension_numbers<[2], [2], [1], [1], [0, 0, 0, 1, 1, 1], [0], [0]>} : vector<2x8x16xbf16>, vector<2x8x16xbf16>, vector<2x8x8xf32> -> vector<2x8x8xf32>
    "tpu.trace_stop"() : () -> ()
    %cst_34 = arith.constant 2.500000e-01 : f32
    %78 = vector.broadcast %cst_34 : f32 to vector<2x8x8xf32>
    %79 = arith.mulf %77, %78 : vector<2x8x8xf32>
    %80 = vector.broadcast %26 : vector<2x1x8xf32> to vector<2x8x8xf32>
    %81 = arith.addf %79, %80 : vector<2x8x8xf32>
    %cst_35 = arith.constant dense<0xFF800000> : vector<2x8xf32>
    %82 = vector.multi_reduction <maximumf>, %81, %cst_35 [2] : vector<2x8x8xf32> to vector<2x8xf32>
    %83 = vector.shape_cast %82 : vector<2x8xf32> to vector<2x8x1xf32>
    %84 = vector.broadcast %83 : vector<2x8x1xf32> to vector<2x8x8xf32>
    %85 = arith.subf %81, %84 : vector<2x8x8xf32>
    %86 = math.exp %85 : vector<2x8x8xf32>
    %cst_36 = arith.constant dense<0.000000e+00> : vector<2x8xf32>
    %87 = vector.multi_reduction <add>, %86, %cst_36 [2] : vector<2x8x8xf32> to vector<2x8xf32>
    %88 = vector.shape_cast %87 : vector<2x8xf32> to vector<2x8x1xf32>
    %89 = tpu.reciprocal %88 {approx = true} : vector<2x8x1xf32> -> vector<2x8x1xf32>
    %90 = vector.broadcast %89 : vector<2x8x1xf32> to vector<2x8x8xf32>
    %91 = arith.mulf %86, %90 : vector<2x8x8xf32>
    %92 = arith.truncf %91 : vector<2x8x8xf32> to vector<2x8x8xbf16>
    "tpu.trace_start"() <{level = 10 : i32, message = "bqk,bkd->bqd"}> : () -> ()
    %cst_37 = arith.constant dense<0.000000e+00> : vector<2x8x16xf32>
    %93 = tpu.matmul %92, %76, %cst_37 {dimension_numbers = #tpu.dot_dimension_numbers<[2], [1], [1], [2], [0, 0, 0, 1, 1, 2], [0], [0]>} : vector<2x8x8xbf16>, vector<2x8x16xbf16>, vector<2x8x16xf32> -> vector<2x8x16xf32>
    "tpu.trace_stop"() : () -> ()
    %94 = vector.shape_cast %93 : vector<2x8x16xf32> to vector<16x16xf32>
    %95 = arith.truncf %94 : vector<16x16xf32> to vector<16x16xbf16>
    %96 = vector.extract_strided_slice %46 {offsets = [1, 0, 0], sizes = [1, 16, 32], strides = [1, 1, 1]} : vector<2x16x32xbf16> to vector<1x16x32xbf16>
    %97 = vector.shape_cast %96 : vector<1x16x32xbf16> to vector<16x32xbf16>
    %cst_38 = arith.constant dense<0.000000e+00> : vector<16x32xf32>
    %98 = tpu.matmul %95, %97, %cst_38 {dimension_numbers = #tpu.dot_dimension_numbers<[1], [0], [0], [1], [0, 0, 1, 1], [], []>} : vector<16x16xbf16>, vector<16x32xbf16>, vector<16x32xf32> -> vector<16x32xf32>
    %99 = arith.addf %73, %98 : vector<16x32xf32>
    %100 = arith.addf %25, %99 : vector<16x32xf32>
    %101 = vector.broadcast %39 : vector<1x32xf32> to vector<16x32xf32>
    %102 = arith.addf %100, %101 : vector<16x32xf32>
    %cst_39 = arith.constant dense<0.000000e+00> : vector<16xf32>
    %103 = vector.multi_reduction <add>, %102, %cst_39 [1] : vector<16x32xf32> to vector<16xf32>
    %104 = vector.shape_cast %103 : vector<16xf32> to vector<16x1xf32>
    %cst_40 = arith.constant 3.200000e+01 : f32
    %105 = vector.broadcast %cst_40 : f32 to vector<16x1xf32>
    %106 = arith.divf %104, %105 : vector<16x1xf32>
    %107 = vector.broadcast %106 : vector<16x1xf32> to vector<16x32xf32>
    %108 = arith.subf %102, %107 : vector<16x32xf32>
    %109 = arith.mulf %108, %108 : vector<16x32xf32>
    %cst_41 = arith.constant dense<0.000000e+00> : vector<16xf32>
    %110 = vector.multi_reduction <add>, %109, %cst_41 [1] : vector<16x32xf32> to vector<16xf32>
    %111 = vector.shape_cast %110 : vector<16xf32> to vector<16x1xf32>
    %cst_42 = arith.constant 3.200000e+01 : f32
    %112 = vector.broadcast %cst_42 : f32 to vector<16x1xf32>
    %113 = arith.divf %111, %112 : vector<16x1xf32>
    %114 = vector.broadcast %106 : vector<16x1xf32> to vector<16x32xf32>
    %115 = arith.subf %102, %114 : vector<16x32xf32>
    %cst_43 = arith.constant 9.99999996E-13 : f32
    %116 = vector.broadcast %cst_43 : f32 to vector<16x1xf32>
    %117 = arith.addf %113, %116 : vector<16x1xf32>
    %118 = math.rsqrt %117 : vector<16x1xf32>
    %119 = vector.broadcast %118 : vector<16x1xf32> to vector<16x32xf32>
    %120 = arith.mulf %115, %119 : vector<16x32xf32>
    %121 = vector.broadcast %40 : vector<1x32xf32> to vector<16x32xf32>
    %122 = arith.mulf %120, %121 : vector<16x32xf32>
    %123 = vector.broadcast %41 : vector<1x32xf32> to vector<16x32xf32>
    %124 = arith.addf %122, %123 : vector<16x32xf32>
    %125 = arith.truncf %124 : vector<16x32xf32> to vector<16x32xbf16>
    %c0_44 = arith.constant 0 : index
    %c0_45 = arith.constant 0 : index
    %c0_46 = arith.constant 0 : index
    %126 = vector.load %arg7[%c0_44, %c0_45, %c0_46] : memref<2x32x128xbf16, #tpu.memory_space<vmem>>, vector<1x32x128xbf16>
    %127 = vector.shape_cast %126 : vector<1x32x128xbf16> to vector<32x128xbf16>
    %cst_47 = arith.constant dense<0.000000e+00> : vector<16x128xf32>
    %128 = tpu.matmul %125, %127, %cst_47 {dimension_numbers = #tpu.dot_dimension_numbers<[1], [0], [0], [1], [0, 0, 1, 1], [], []>} : vector<16x32xbf16>, vector<32x128xbf16>, vector<16x128xf32> -> vector<16x128xf32>
    %c0_48 = arith.constant 0 : index
    %c0_49 = arith.constant 0 : index
    %c0_50 = arith.constant 0 : index
    %129 = vector.load %arg8[%c0_48, %c0_49, %c0_50] : memref<2x1x128xf32, #tpu.memory_space<vmem>>, vector<1x1x128xf32>
    %130 = vector.shape_cast %129 : vector<1x1x128xf32> to vector<1x128xf32>
    %131 = vector.broadcast %130 : vector<1x128xf32> to vector<16x128xf32>
    %132 = arith.addf %128, %131 : vector<16x128xf32>
    %133 = arith.mulf %132, %132 : vector<16x128xf32>
    %134 = arith.mulf %132, %133 : vector<16x128xf32>
    %cst_51 = arith.constant 4.471500e-02 : f32
    %135 = vector.broadcast %cst_51 : f32 to vector<16x128xf32>
    %136 = arith.mulf %135, %134 : vector<16x128xf32>
    %137 = arith.addf %132, %136 : vector<16x128xf32>
    %cst_52 = arith.constant 0.797884583 : f32
    %138 = vector.broadcast %cst_52 : f32 to vector<16x128xf32>
    %139 = arith.mulf %138, %137 : vector<16x128xf32>
    %140 = math.tanh %139 : vector<16x128xf32>
    %cst_53 = arith.constant 1.000000e+00 : f32
    %141 = vector.broadcast %cst_53 : f32 to vector<16x128xf32>
    %142 = arith.addf %141, %140 : vector<16x128xf32>
    %cst_54 = arith.constant 5.000000e-01 : f32
    %143 = vector.broadcast %cst_54 : f32 to vector<16x128xf32>
    %144 = arith.mulf %143, %142 : vector<16x128xf32>
    %145 = arith.mulf %132, %144 : vector<16x128xf32>
    %146 = arith.truncf %145 : vector<16x128xf32> to vector<16x128xbf16>
    %c0_55 = arith.constant 0 : index
    %c0_56 = arith.constant 0 : index
    %c0_57 = arith.constant 0 : index
    %147 = vector.load %arg9[%c0_55, %c0_56, %c0_57] : memref<2x128x32xbf16, #tpu.memory_space<vmem>>, vector<1x128x32xbf16>
    %148 = vector.shape_cast %147 : vector<1x128x32xbf16> to vector<128x32xbf16>
    %cst_58 = arith.constant dense<0.000000e+00> : vector<16x32xf32>
    %149 = tpu.matmul %146, %148, %cst_58 {dimension_numbers = #tpu.dot_dimension_numbers<[1], [0], [0], [1], [0, 0, 1, 1], [], []>} : vector<16x128xbf16>, vector<128x32xbf16>, vector<16x32xf32> -> vector<16x32xf32>
    %150 = vector.broadcast %44 : vector<1x32xf32> to vector<16x32xf32>
    %151 = arith.addf %149, %150 : vector<16x32xf32>
    %152 = arith.addf %124, %151 : vector<16x32xf32>
    %cst_59 = arith.constant dense<0.000000e+00> : vector<16xf32>
    %153 = vector.multi_reduction <add>, %152, %cst_59 [1] : vector<16x32xf32> to vector<16xf32>
    %154 = vector.shape_cast %153 : vector<16xf32> to vector<16x1xf32>
    %cst_60 = arith.constant 3.200000e+01 : f32
    %155 = vector.broadcast %cst_60 : f32 to vector<16x1xf32>
    %156 = arith.divf %154, %155 : vector<16x1xf32>
    %157 = vector.broadcast %156 : vector<16x1xf32> to vector<16x32xf32>
    %158 = arith.subf %152, %157 : vector<16x32xf32>
    %159 = arith.mulf %158, %158 : vector<16x32xf32>
    %cst_61 = arith.constant dense<0.000000e+00> : vector<16xf32>
    %160 = vector.multi_reduction <add>, %159, %cst_61 [1] : vector<16x32xf32> to vector<16xf32>
    %161 = vector.shape_cast %160 : vector<16xf32> to vector<16x1xf32>
    %cst_62 = arith.constant 3.200000e+01 : f32
    %162 = vector.broadcast %cst_62 : f32 to vector<16x1xf32>
    %163 = arith.divf %161, %162 : vector<16x1xf32>
    %164 = vector.broadcast %156 : vector<16x1xf32> to vector<16x32xf32>
    %165 = arith.subf %152, %164 : vector<16x32xf32>
    %cst_63 = arith.constant 9.99999996E-13 : f32
    %166 = vector.broadcast %cst_63 : f32 to vector<16x1xf32>
    %167 = arith.addf %163, %166 : vector<16x1xf32>
    %168 = math.rsqrt %167 : vector<16x1xf32>
    %169 = vector.broadcast %168 : vector<16x1xf32> to vector<16x32xf32>
    %170 = arith.mulf %165, %169 : vector<16x32xf32>
    %171 = vector.broadcast %42 : vector<1x32xf32> to vector<16x32xf32>
    %172 = arith.mulf %170, %171 : vector<16x32xf32>
    %173 = vector.broadcast %43 : vector<1x32xf32> to vector<16x32xf32>
    %174 = arith.addf %172, %173 : vector<16x32xf32>
    %175 = arith.truncf %174 : vector<16x32xf32> to vector<16x32xbf16>
    %c1_64 = arith.constant 1 : index
    %c0_65 = arith.constant 0 : index
    %c0_66 = arith.constant 0 : index
    %176 = vector.load %arg3[%c1_64, %c0_65, %c0_66] : memref<2x32x128xbf16, #tpu.memory_space<vmem>>, vector<1x32x128xbf16>
    %177 = vector.shape_cast %176 : vector<1x32x128xbf16> to vector<32x128xbf16>
    %cst_67 = arith.constant dense<0.000000e+00> : vector<16x128xf32>
    %178 = tpu.matmul %175, %177, %cst_67 {dimension_numbers = #tpu.dot_dimension_numbers<[1], [0], [0], [1], [0, 0, 1, 1], [], []>} : vector<16x32xbf16>, vector<32x128xbf16>, vector<16x128xf32> -> vector<16x128xf32>
    %c1_68 = arith.constant 1 : index
    %c0_69 = arith.constant 0 : index
    %c0_70 = arith.constant 0 : index
    %179 = vector.load %arg4[%c1_68, %c0_69, %c0_70] : memref<2x1x128xf32, #tpu.memory_space<vmem>>, vector<1x1x128xf32>
    %180 = vector.shape_cast %179 : vector<1x1x128xf32> to vector<1x128xf32>
    %181 = vector.broadcast %180 : vector<1x128xf32> to vector<16x128xf32>
    %182 = arith.addf %178, %181 : vector<16x128xf32>
    %183 = arith.truncf %182 : vector<16x128xf32> to vector<16x128xbf16>
    %184 = vector.shape_cast %183 : vector<16x128xbf16> to vector<2x8x128xbf16>
    %c1_71 = arith.constant 1 : index
    %c0_72 = arith.constant 0 : index
    %c0_73 = arith.constant 0 : index
    %185 = vector.load %arg6[%c1_71, %c0_72, %c0_73] : memref<2x6x32xf32, #tpu.memory_space<vmem>>, vector<1x6x32xf32>
    %186 = vector.shape_cast %185 : vector<1x6x32xf32> to vector<6x32xf32>
    %187 = vector.extract_strided_slice %186 {offsets = [0, 0], sizes = [1, 32], strides = [1, 1]} : vector<6x32xf32> to vector<1x32xf32>
    %188 = vector.extract_strided_slice %186 {offsets = [1, 0], sizes = [1, 32], strides = [1, 1]} : vector<6x32xf32> to vector<1x32xf32>
    %189 = vector.extract_strided_slice %186 {offsets = [2, 0], sizes = [1, 32], strides = [1, 1]} : vector<6x32xf32> to vector<1x32xf32>
    %190 = vector.extract_strided_slice %186 {offsets = [3, 0], sizes = [1, 32], strides = [1, 1]} : vector<6x32xf32> to vector<1x32xf32>
    %191 = vector.extract_strided_slice %186 {offsets = [4, 0], sizes = [1, 32], strides = [1, 1]} : vector<6x32xf32> to vector<1x32xf32>
    %192 = vector.extract_strided_slice %186 {offsets = [5, 0], sizes = [1, 32], strides = [1, 1]} : vector<6x32xf32> to vector<1x32xf32>
    %c1_74 = arith.constant 1 : index
    %c0_75 = arith.constant 0 : index
    %c0_76 = arith.constant 0 : index
    %c0_77 = arith.constant 0 : index
    %193 = vector.load %arg5[%c1_74, %c0_75, %c0_76, %c0_77] : memref<2x2x16x32xbf16, #tpu.memory_space<vmem>>, vector<1x2x16x32xbf16>
    %194 = vector.shape_cast %193 : vector<1x2x16x32xbf16> to vector<2x16x32xbf16>
    %cst_78 = arith.constant 0.000000e+00 : f32
    %195 = vector.broadcast %cst_78 : f32 to vector<16x32xf32>
    %196 = vector.extract_strided_slice %184 {offsets = [0, 0, 0], sizes = [2, 8, 16], strides = [1, 1, 1]} : vector<2x8x128xbf16> to vector<2x8x16xbf16>
    %197 = vector.extract_strided_slice %184 {offsets = [0, 0, 32], sizes = [2, 8, 16], strides = [1, 1, 1]} : vector<2x8x128xbf16> to vector<2x8x16xbf16>
    %198 = vector.extract_strided_slice %184 {offsets = [0, 0, 64], sizes = [2, 8, 16], strides = [1, 1, 1]} : vector<2x8x128xbf16> to vector<2x8x16xbf16>
    "tpu.trace_start"() <{level = 10 : i32, message = "bqd,bkd->bqk"}> : () -> ()
    %cst_79 = arith.constant dense<0.000000e+00> : vector<2x8x8xf32>
    %199 = tpu.matmul %196, %197, %cst_79 {dimension_numbers = #tpu.dot_dimension_numbers<[2], [2], [1], [1], [0, 0, 0, 1, 1, 1], [0], [0]>} : vector<2x8x16xbf16>, vector<2x8x16xbf16>, vector<2x8x8xf32> -> vector<2x8x8xf32>
    "tpu.trace_stop"() : () -> ()
    %cst_80 = arith.constant 2.500000e-01 : f32
    %200 = vector.broadcast %cst_80 : f32 to vector<2x8x8xf32>
    %201 = arith.mulf %199, %200 : vector<2x8x8xf32>
    %202 = vector.broadcast %26 : vector<2x1x8xf32> to vector<2x8x8xf32>
    %203 = arith.addf %201, %202 : vector<2x8x8xf32>
    %cst_81 = arith.constant dense<0xFF800000> : vector<2x8xf32>
    %204 = vector.multi_reduction <maximumf>, %203, %cst_81 [2] : vector<2x8x8xf32> to vector<2x8xf32>
    %205 = vector.shape_cast %204 : vector<2x8xf32> to vector<2x8x1xf32>
    %206 = vector.broadcast %205 : vector<2x8x1xf32> to vector<2x8x8xf32>
    %207 = arith.subf %203, %206 : vector<2x8x8xf32>
    %208 = math.exp %207 : vector<2x8x8xf32>
    %cst_82 = arith.constant dense<0.000000e+00> : vector<2x8xf32>
    %209 = vector.multi_reduction <add>, %208, %cst_82 [2] : vector<2x8x8xf32> to vector<2x8xf32>
    %210 = vector.shape_cast %209 : vector<2x8xf32> to vector<2x8x1xf32>
    %211 = tpu.reciprocal %210 {approx = true} : vector<2x8x1xf32> -> vector<2x8x1xf32>
    %212 = vector.broadcast %211 : vector<2x8x1xf32> to vector<2x8x8xf32>
    %213 = arith.mulf %208, %212 : vector<2x8x8xf32>
    %214 = arith.truncf %213 : vector<2x8x8xf32> to vector<2x8x8xbf16>
    "tpu.trace_start"() <{level = 10 : i32, message = "bqk,bkd->bqd"}> : () -> ()
    %cst_83 = arith.constant dense<0.000000e+00> : vector<2x8x16xf32>
    %215 = tpu.matmul %214, %198, %cst_83 {dimension_numbers = #tpu.dot_dimension_numbers<[2], [1], [1], [2], [0, 0, 0, 1, 1, 2], [0], [0]>} : vector<2x8x8xbf16>, vector<2x8x16xbf16>, vector<2x8x16xf32> -> vector<2x8x16xf32>
    "tpu.trace_stop"() : () -> ()
    %216 = vector.shape_cast %215 : vector<2x8x16xf32> to vector<16x16xf32>
    %217 = arith.truncf %216 : vector<16x16xf32> to vector<16x16xbf16>
    %218 = vector.extract_strided_slice %194 {offsets = [0, 0, 0], sizes = [1, 16, 32], strides = [1, 1, 1]} : vector<2x16x32xbf16> to vector<1x16x32xbf16>
    %219 = vector.shape_cast %218 : vector<1x16x32xbf16> to vector<16x32xbf16>
    %cst_84 = arith.constant dense<0.000000e+00> : vector<16x32xf32>
    %220 = tpu.matmul %217, %219, %cst_84 {dimension_numbers = #tpu.dot_dimension_numbers<[1], [0], [0], [1], [0, 0, 1, 1], [], []>} : vector<16x16xbf16>, vector<16x32xbf16>, vector<16x32xf32> -> vector<16x32xf32>
    %221 = arith.addf %195, %220 : vector<16x32xf32>
    %222 = vector.extract_strided_slice %184 {offsets = [0, 0, 16], sizes = [2, 8, 16], strides = [1, 1, 1]} : vector<2x8x128xbf16> to vector<2x8x16xbf16>
    %223 = vector.extract_strided_slice %184 {offsets = [0, 0, 48], sizes = [2, 8, 16], strides = [1, 1, 1]} : vector<2x8x128xbf16> to vector<2x8x16xbf16>
    %224 = vector.extract_strided_slice %184 {offsets = [0, 0, 80], sizes = [2, 8, 16], strides = [1, 1, 1]} : vector<2x8x128xbf16> to vector<2x8x16xbf16>
    "tpu.trace_start"() <{level = 10 : i32, message = "bqd,bkd->bqk"}> : () -> ()
    %cst_85 = arith.constant dense<0.000000e+00> : vector<2x8x8xf32>
    %225 = tpu.matmul %222, %223, %cst_85 {dimension_numbers = #tpu.dot_dimension_numbers<[2], [2], [1], [1], [0, 0, 0, 1, 1, 1], [0], [0]>} : vector<2x8x16xbf16>, vector<2x8x16xbf16>, vector<2x8x8xf32> -> vector<2x8x8xf32>
    "tpu.trace_stop"() : () -> ()
    %cst_86 = arith.constant 2.500000e-01 : f32
    %226 = vector.broadcast %cst_86 : f32 to vector<2x8x8xf32>
    %227 = arith.mulf %225, %226 : vector<2x8x8xf32>
    %228 = vector.broadcast %26 : vector<2x1x8xf32> to vector<2x8x8xf32>
    %229 = arith.addf %227, %228 : vector<2x8x8xf32>
    %cst_87 = arith.constant dense<0xFF800000> : vector<2x8xf32>
    %230 = vector.multi_reduction <maximumf>, %229, %cst_87 [2] : vector<2x8x8xf32> to vector<2x8xf32>
    %231 = vector.shape_cast %230 : vector<2x8xf32> to vector<2x8x1xf32>
    %232 = vector.broadcast %231 : vector<2x8x1xf32> to vector<2x8x8xf32>
    %233 = arith.subf %229, %232 : vector<2x8x8xf32>
    %234 = math.exp %233 : vector<2x8x8xf32>
    %cst_88 = arith.constant dense<0.000000e+00> : vector<2x8xf32>
    %235 = vector.multi_reduction <add>, %234, %cst_88 [2] : vector<2x8x8xf32> to vector<2x8xf32>
    %236 = vector.shape_cast %235 : vector<2x8xf32> to vector<2x8x1xf32>
    %237 = tpu.reciprocal %236 {approx = true} : vector<2x8x1xf32> -> vector<2x8x1xf32>
    %238 = vector.broadcast %237 : vector<2x8x1xf32> to vector<2x8x8xf32>
    %239 = arith.mulf %234, %238 : vector<2x8x8xf32>
    %240 = arith.truncf %239 : vector<2x8x8xf32> to vector<2x8x8xbf16>
    "tpu.trace_start"() <{level = 10 : i32, message = "bqk,bkd->bqd"}> : () -> ()
    %cst_89 = arith.constant dense<0.000000e+00> : vector<2x8x16xf32>
    %241 = tpu.matmul %240, %224, %cst_89 {dimension_numbers = #tpu.dot_dimension_numbers<[2], [1], [1], [2], [0, 0, 0, 1, 1, 2], [0], [0]>} : vector<2x8x8xbf16>, vector<2x8x16xbf16>, vector<2x8x16xf32> -> vector<2x8x16xf32>
    "tpu.trace_stop"() : () -> ()
    %242 = vector.shape_cast %241 : vector<2x8x16xf32> to vector<16x16xf32>
    %243 = arith.truncf %242 : vector<16x16xf32> to vector<16x16xbf16>
    %244 = vector.extract_strided_slice %194 {offsets = [1, 0, 0], sizes = [1, 16, 32], strides = [1, 1, 1]} : vector<2x16x32xbf16> to vector<1x16x32xbf16>
    %245 = vector.shape_cast %244 : vector<1x16x32xbf16> to vector<16x32xbf16>
    %cst_90 = arith.constant dense<0.000000e+00> : vector<16x32xf32>
    %246 = tpu.matmul %243, %245, %cst_90 {dimension_numbers = #tpu.dot_dimension_numbers<[1], [0], [0], [1], [0, 0, 1, 1], [], []>} : vector<16x16xbf16>, vector<16x32xbf16>, vector<16x32xf32> -> vector<16x32xf32>
    %247 = arith.addf %221, %246 : vector<16x32xf32>
    %248 = arith.addf %174, %247 : vector<16x32xf32>
    %249 = vector.broadcast %187 : vector<1x32xf32> to vector<16x32xf32>
    %250 = arith.addf %248, %249 : vector<16x32xf32>
    %cst_91 = arith.constant dense<0.000000e+00> : vector<16xf32>
    %251 = vector.multi_reduction <add>, %250, %cst_91 [1] : vector<16x32xf32> to vector<16xf32>
    %252 = vector.shape_cast %251 : vector<16xf32> to vector<16x1xf32>
    %cst_92 = arith.constant 3.200000e+01 : f32
    %253 = vector.broadcast %cst_92 : f32 to vector<16x1xf32>
    %254 = arith.divf %252, %253 : vector<16x1xf32>
    %255 = vector.broadcast %254 : vector<16x1xf32> to vector<16x32xf32>
    %256 = arith.subf %250, %255 : vector<16x32xf32>
    %257 = arith.mulf %256, %256 : vector<16x32xf32>
    %cst_93 = arith.constant dense<0.000000e+00> : vector<16xf32>
    %258 = vector.multi_reduction <add>, %257, %cst_93 [1] : vector<16x32xf32> to vector<16xf32>
    %259 = vector.shape_cast %258 : vector<16xf32> to vector<16x1xf32>
    %cst_94 = arith.constant 3.200000e+01 : f32
    %260 = vector.broadcast %cst_94 : f32 to vector<16x1xf32>
    %261 = arith.divf %259, %260 : vector<16x1xf32>
    %262 = vector.broadcast %254 : vector<16x1xf32> to vector<16x32xf32>
    %263 = arith.subf %250, %262 : vector<16x32xf32>
    %cst_95 = arith.constant 9.99999996E-13 : f32
    %264 = vector.broadcast %cst_95 : f32 to vector<16x1xf32>
    %265 = arith.addf %261, %264 : vector<16x1xf32>
    %266 = math.rsqrt %265 : vector<16x1xf32>
    %267 = vector.broadcast %266 : vector<16x1xf32> to vector<16x32xf32>
    %268 = arith.mulf %263, %267 : vector<16x32xf32>
    %269 = vector.broadcast %188 : vector<1x32xf32> to vector<16x32xf32>
    %270 = arith.mulf %268, %269 : vector<16x32xf32>
    %271 = vector.broadcast %189 : vector<1x32xf32> to vector<16x32xf32>
    %272 = arith.addf %270, %271 : vector<16x32xf32>
    %273 = arith.truncf %272 : vector<16x32xf32> to vector<16x32xbf16>
    %c1_96 = arith.constant 1 : index
    %c0_97 = arith.constant 0 : index
    %c0_98 = arith.constant 0 : index
    %274 = vector.load %arg7[%c1_96, %c0_97, %c0_98] : memref<2x32x128xbf16, #tpu.memory_space<vmem>>, vector<1x32x128xbf16>
    %275 = vector.shape_cast %274 : vector<1x32x128xbf16> to vector<32x128xbf16>
    %cst_99 = arith.constant dense<0.000000e+00> : vector<16x128xf32>
    %276 = tpu.matmul %273, %275, %cst_99 {dimension_numbers = #tpu.dot_dimension_numbers<[1], [0], [0], [1], [0, 0, 1, 1], [], []>} : vector<16x32xbf16>, vector<32x128xbf16>, vector<16x128xf32> -> vector<16x128xf32>
    %c1_100 = arith.constant 1 : index
    %c0_101 = arith.constant 0 : index
    %c0_102 = arith.constant 0 : index
    %277 = vector.load %arg8[%c1_100, %c0_101, %c0_102] : memref<2x1x128xf32, #tpu.memory_space<vmem>>, vector<1x1x128xf32>
    %278 = vector.shape_cast %277 : vector<1x1x128xf32> to vector<1x128xf32>
    %279 = vector.broadcast %278 : vector<1x128xf32> to vector<16x128xf32>
    %280 = arith.addf %276, %279 : vector<16x128xf32>
    %281 = arith.mulf %280, %280 : vector<16x128xf32>
    %282 = arith.mulf %280, %281 : vector<16x128xf32>
    %cst_103 = arith.constant 4.471500e-02 : f32
    %283 = vector.broadcast %cst_103 : f32 to vector<16x128xf32>
    %284 = arith.mulf %283, %282 : vector<16x128xf32>
    %285 = arith.addf %280, %284 : vector<16x128xf32>
    %cst_104 = arith.constant 0.797884583 : f32
    %286 = vector.broadcast %cst_104 : f32 to vector<16x128xf32>
    %287 = arith.mulf %286, %285 : vector<16x128xf32>
    %288 = math.tanh %287 : vector<16x128xf32>
    %cst_105 = arith.constant 1.000000e+00 : f32
    %289 = vector.broadcast %cst_105 : f32 to vector<16x128xf32>
    %290 = arith.addf %289, %288 : vector<16x128xf32>
    %cst_106 = arith.constant 5.000000e-01 : f32
    %291 = vector.broadcast %cst_106 : f32 to vector<16x128xf32>
    %292 = arith.mulf %291, %290 : vector<16x128xf32>
    %293 = arith.mulf %280, %292 : vector<16x128xf32>
    %294 = arith.truncf %293 : vector<16x128xf32> to vector<16x128xbf16>
    %c1_107 = arith.constant 1 : index
    %c0_108 = arith.constant 0 : index
    %c0_109 = arith.constant 0 : index
    %295 = vector.load %arg9[%c1_107, %c0_108, %c0_109] : memref<2x128x32xbf16, #tpu.memory_space<vmem>>, vector<1x128x32xbf16>
    %296 = vector.shape_cast %295 : vector<1x128x32xbf16> to vector<128x32xbf16>
    %cst_110 = arith.constant dense<0.000000e+00> : vector<16x32xf32>
    %297 = tpu.matmul %294, %296, %cst_110 {dimension_numbers = #tpu.dot_dimension_numbers<[1], [0], [0], [1], [0, 0, 1, 1], [], []>} : vector<16x128xbf16>, vector<128x32xbf16>, vector<16x32xf32> -> vector<16x32xf32>
    %298 = vector.broadcast %192 : vector<1x32xf32> to vector<16x32xf32>
    %299 = arith.addf %297, %298 : vector<16x32xf32>
    %300 = arith.addf %272, %299 : vector<16x32xf32>
    %cst_111 = arith.constant dense<0.000000e+00> : vector<16xf32>
    %301 = vector.multi_reduction <add>, %300, %cst_111 [1] : vector<16x32xf32> to vector<16xf32>
    %302 = vector.shape_cast %301 : vector<16xf32> to vector<16x1xf32>
    %cst_112 = arith.constant 3.200000e+01 : f32
    %303 = vector.broadcast %cst_112 : f32 to vector<16x1xf32>
    %304 = arith.divf %302, %303 : vector<16x1xf32>
    %305 = vector.broadcast %304 : vector<16x1xf32> to vector<16x32xf32>
    %306 = arith.subf %300, %305 : vector<16x32xf32>
    %307 = arith.mulf %306, %306 : vector<16x32xf32>
    %cst_113 = arith.constant dense<0.000000e+00> : vector<16xf32>
    %308 = vector.multi_reduction <add>, %307, %cst_113 [1] : vector<16x32xf32> to vector<16xf32>
    %309 = vector.shape_cast %308 : vector<16xf32> to vector<16x1xf32>
    %cst_114 = arith.constant 3.200000e+01 : f32
    %310 = vector.broadcast %cst_114 : f32 to vector<16x1xf32>
    %311 = arith.divf %309, %310 : vector<16x1xf32>
    %312 = vector.broadcast %304 : vector<16x1xf32> to vector<16x32xf32>
    %313 = arith.subf %300, %312 : vector<16x32xf32>
    %cst_115 = arith.constant 9.99999996E-13 : f32
    %314 = vector.broadcast %cst_115 : f32 to vector<16x1xf32>
    %315 = arith.addf %311, %314 : vector<16x1xf32>
    %316 = math.rsqrt %315 : vector<16x1xf32>
    %317 = vector.broadcast %316 : vector<16x1xf32> to vector<16x32xf32>
    %318 = arith.mulf %313, %317 : vector<16x32xf32>
    %319 = vector.broadcast %190 : vector<1x32xf32> to vector<16x32xf32>
    %320 = arith.mulf %318, %319 : vector<16x32xf32>
    %321 = vector.broadcast %191 : vector<1x32xf32> to vector<16x32xf32>
    %322 = arith.addf %320, %321 : vector<16x32xf32>
    %323 = vector.shape_cast %322 : vector<16x32xf32> to vector<2x8x32xf32>
    %324 = vector.extract_strided_slice %323 {offsets = [0, 0, 0], sizes = [2, 1, 32], strides = [1, 1, 1]} : vector<2x8x32xf32> to vector<2x1x32xf32>
    %325 = vector.shape_cast %324 : vector<2x1x32xf32> to vector<2x32xf32>
    %326 = arith.truncf %325 : vector<2x32xf32> to vector<2x32xbf16>
    %c0_116 = arith.constant 0 : index
    %c0_117 = arith.constant 0 : index
    %327 = vector.load %arg10[%c0_116, %c0_117] : memref<32x32xbf16, #tpu.memory_space<vmem>>, vector<32x32xbf16>
    %cst_118 = arith.constant dense<0.000000e+00> : vector<2x32xf32>
    %328 = tpu.matmul %326, %327, %cst_118 {dimension_numbers = #tpu.dot_dimension_numbers<[1], [0], [0], [1], [0, 0, 1, 1], [], []>} : vector<2x32xbf16>, vector<32x32xbf16>, vector<2x32xf32> -> vector<2x32xf32>
    %c0_119 = arith.constant 0 : index
    %c0_120 = arith.constant 0 : index
    %329 = vector.load %arg11[%c0_119, %c0_120] : memref<1x32xf32, #tpu.memory_space<vmem>>, vector<1x32xf32>
    %330 = vector.broadcast %329 : vector<1x32xf32> to vector<2x32xf32>
    %331 = arith.addf %328, %330 : vector<2x32xf32>
    %332 = math.tanh %331 : vector<2x32xf32>
    %333 = arith.truncf %332 : vector<2x32xf32> to vector<2x32xbf16>
    %c0_121 = arith.constant 0 : index
    %c0_122 = arith.constant 0 : index
    %334 = vector.load %arg12[%c0_121, %c0_122] : memref<32x128xbf16, #tpu.memory_space<vmem>>, vector<32x128xbf16>
    %cst_123 = arith.constant dense<0.000000e+00> : vector<2x128xf32>
    %335 = tpu.matmul %333, %334, %cst_123 {dimension_numbers = #tpu.dot_dimension_numbers<[1], [0], [0], [1], [0, 0, 1, 1], [], []>} : vector<2x32xbf16>, vector<32x128xbf16>, vector<2x128xf32> -> vector<2x128xf32>
    %c0_124 = arith.constant 0 : index
    %c0_125 = arith.constant 0 : index
    %336 = vector.load %arg13[%c0_124, %c0_125] : memref<1x128xf32, #tpu.memory_space<vmem>>, vector<1x128xf32>
    %337 = vector.broadcast %336 : vector<1x128xf32> to vector<2x128xf32>
    %338 = arith.addf %335, %337 : vector<2x128xf32>
    %339 = arith.negf %338 : vector<2x128xf32>
    %340 = math.exp %339 : vector<2x128xf32>
    %cst_126 = arith.constant 1.000000e+00 : f32
    %341 = vector.broadcast %cst_126 : f32 to vector<2x128xf32>
    %342 = arith.addf %341, %340 : vector<2x128xf32>
    %343 = arith.divf %341, %342 : vector<2x128xf32>
    %c0_127 = arith.constant 0 : index
    %c0_128 = arith.constant 0 : index
    %344 = vector.load %arg14[%c0_127, %c0_128] : memref<2x128xf32, #tpu.memory_space<vmem>>, vector<2x128xf32>
    tpu.vector_store %arg14[%c0_127, %c0_128], %343 {strides = array<i32>} : memref<2x128xf32, #tpu.memory_space<vmem>>, vector<2x128xf32>,
    return
  }
}

</mosaic_0001>

<llo_original>
// kernel: bert_classifier_forward.1
$region0: #{bert_classifier_forward.1}
  #allocation0 [shape = 'u32[]', space=smem, size = 0x4, offset = 0x4, fixed_abs, tag = 'smem constant byte address 0x4 - core index']
  #allocation1 [shape = 'u32[144,128]{1,0:T(1,128)}', space=vmem, size = 0x12000, scoped, tag = 'internal scratch']
  %s0 = inlined_call_operand.vmem [shape: f32[2,8,32], index: 0, kind: input, shape index: {}]
  %s1 = inlined_call_operand.vmem [shape: f32[2,32], index: 1, kind: input, shape index: {}]
  %s2 = inlined_call_operand.vmem [shape: f32[2,1,8], index: 2, kind: input, shape index: {}]
  %s3 = inlined_call_operand.vmem [shape: bf16[2,32,128], index: 3, kind: input, shape index: {}]
  %s4 = inlined_call_operand.vmem [shape: f32[2,1,128], index: 4, kind: input, shape index: {}]
  %s5 = inlined_call_operand.vmem [shape: bf16[2,2,16,32], index: 5, kind: input, shape index: {}]
  %s6 = inlined_call_operand.vmem [shape: f32[2,6,32], index: 6, kind: input, shape index: {}]
  %s7 = inlined_call_operand.vmem [shape: bf16[2,32,128], index: 7, kind: input, shape index: {}]
  %s8 = inlined_call_operand.vmem [shape: f32[2,1,128], index: 8, kind: input, shape index: {}]
  %s9 = inlined_call_operand.vmem [shape: bf16[2,128,32], index: 9, kind: input, shape index: {}]
  %s10 = inlined_call_operand.vmem [shape: bf16[32,32], index: 10, kind: input, shape index: {}]
  %s11 = inlined_call_operand.vmem [shape: f32[1,32], index: 11, kind: input, shape index: {}]
  %s12 = inlined_call_operand.vmem [shape: bf16[32,128], index: 12, kind: input, shape index: {}]
  %s13 = inlined_call_operand.vmem [shape: f32[1,128], index: 13, kind: input, shape index: {}]
  %s14 = inlined_call_operand.hbm [shape: f32[2,128], index: 14, kind: output, shape index: {}]
  %s15 = sld [smem:[#allocation0]]
  $region66: #{bert_classifier_forward.1} parent=0
    _
  %s17 = ssub.s32 1, %s15
  %s18 = scalar_select 0, %s17, %s15
  $region1: #{bert_classifier_forward.1} parent=0
    #allocation2 [shape = 'u8[1024]{0}', space=vmem, size = 0x400, scoped, tag = 'output window, operand 0, single buffered']
    #allocation3 [shape = 's32[1]{0}', space=sflag, size = 0x4, scoped, tag = 'scoped memory for bert_classifier_forward.1']
    %19 = vsyncpa [#allocation3], 0
    // Predicated region
    $region2: #{bert_classifier_forward.1} parent=1 // pred_check
      _
    $region3: #{bert_classifier_forward.1} parent=1 // pred_check_branch
      %21 = sbr.rel (0) target = $region5
    $region4: #{bert_classifier_forward.1} parent=1 // pred_region
      _
    $region5: #{bert_classifier_forward.1} parent=1 // pred_fallthru
      _
    // Predicated region
    $region6: #{bert_classifier_forward.1} parent=1 // pred_check
      _
    $region7: #{bert_classifier_forward.1} parent=1 // pred_check_branch
      %23 = sbr.rel (0) target = $region9
    $region8: #{bert_classifier_forward.1} parent=1 // pred_region
      _
    $region9: #{bert_classifier_forward.1} parent=1 // pred_fallthru
      _
    // Predicated region
    $region10: #{bert_classifier_forward.1} parent=1 // pred_check
      _
    $region11: #{bert_classifier_forward.1} parent=1 // pred_check_branch
      %25 = sbr.rel (0) target = $region13
    $region12: #{bert_classifier_forward.1} parent=1 // pred_region
      _
    $region13: #{bert_classifier_forward.1} parent=1 // pred_fallthru
      _
    // Predicated region
    $region14: #{bert_classifier_forward.1} parent=1 // pred_check
      _
    $region15: #{bert_classifier_forward.1} parent=1 // pred_check_branch
      %27 = sbr.rel (0) target = $region17
    $region16: #{bert_classifier_forward.1} parent=1 // pred_region
      _
    $region17: #{bert_classifier_forward.1} parent=1 // pred_fallthru
      _
    // Predicated region
    $region18: #{bert_classifier_forward.1} parent=1 // pred_check
      _
    $region19: #{bert_classifier_forward.1} parent=1 // pred_check_branch
      %29 = sbr.rel (0) target = $region21
    $region20: #{bert_classifier_forward.1} parent=1 // pred_region
      _
    $region21: #{bert_classifier_forward.1} parent=1 // pred_fallthru
      _
    // Predicated region
    $region22: #{bert_classifier_forward.1} parent=1 // pred_check
      _
    $region23: #{bert_classifier_forward.1} parent=1 // pred_check_branch
      %31 = sbr.rel (0) target = $region25
    $region24: #{bert_classifier_forward.1} parent=1 // pred_region
      _
    $region25: #{bert_classifier_forward.1} parent=1 // pred_fallthru
      _
    // Predicated region
    $region26: #{bert_classifier_forward.1} parent=1 // pred_check
      _
    $region27: #{bert_classifier_forward.1} parent=1 // pred_check_branch
      %33 = sbr.rel (0) target = $region29
    $region28: #{bert_classifier_forward.1} parent=1 // pred_region
      _
    $region29: #{bert_classifier_forward.1} parent=1 // pred_fallthru
      _
    // Predicated region
    $region30: #{bert_classifier_forward.1} parent=1 // pred_check
      _
    $region31: #{bert_classifier_forward.1} parent=1 // pred_check_branch
      %35 = sbr.rel (0) target = $region33
    $region32: #{bert_classifier_forward.1} parent=1 // pred_region
      _
    $region33: #{bert_classifier_forward.1} parent=1 // pred_fallthru
      _
    // Predicated region
    $region34: #{bert_classifier_forward.1} parent=1 // pred_check
      _
    $region35: #{bert_classifier_forward.1} parent=1 // pred_check_branch
      %37 = sbr.rel (0) target = $region37
    $region36: #{bert_classifier_forward.1} parent=1 // pred_region
      _
    $region37: #{bert_classifier_forward.1} parent=1 // pred_fallthru
      _
    // Predicated region
    $region38: #{bert_classifier_forward.1} parent=1 // pred_check
      _
    $region39: #{bert_classifier_forward.1} parent=1 // pred_check_branch
      %39 = sbr.rel (0) target = $region41
    $region40: #{bert_classifier_forward.1} parent=1 // pred_region
      _
    $region41: #{bert_classifier_forward.1} parent=1 // pred_fallthru
      _
    // Predicated region
    $region42: #{bert_classifier_forward.1} parent=1 // pred_check
      _
    $region43: #{bert_classifier_forward.1} parent=1 // pred_check_branch
      %41 = sbr.rel (0) target = $region45
    $region44: #{bert_classifier_forward.1} parent=1 // pred_region
      _
    $region45: #{bert_classifier_forward.1} parent=1 // pred_fallthru
      _
    // Predicated region
    $region46: #{bert_classifier_forward.1} parent=1 // pred_check
      _
    $region47: #{bert_classifier_forward.1} parent=1 // pred_check_branch
      %43 = sbr.rel (0) target = $region49
    $region48: #{bert_classifier_forward.1} parent=1 // pred_region
      _
    $region49: #{bert_classifier_forward.1} parent=1 // pred_fallthru
      _
    // Predicated region
    $region50: #{bert_classifier_forward.1} parent=1 // pred_check
      _
    $region51: #{bert_classifier_forward.1} parent=1 // pred_check_branch
      %45 = sbr.rel (0) target = $region53
    $region52: #{bert_classifier_forward.1} parent=1 // pred_region
      _
    $region53: #{bert_classifier_forward.1} parent=1 // pred_fallthru
      _
    // Predicated region
    $region54: #{bert_classifier_forward.1} parent=1 // pred_check
      _
    $region55: #{bert_classifier_forward.1} parent=1 // pred_check_branch
      %47 = sbr.rel (0) target = $region57
    $region56: #{bert_classifier_forward.1} parent=1 // pred_region
      _
    $region57: #{bert_classifier_forward.1} parent=1 // pred_fallthru
      _
    %v49 = vld [vmem:[%s0] sm:$0xff]
    %v50 = vld [vmem:[%s0 + $0x8] sm:$0xff]
    %v51 = vld [vmem:[%s1] sm:$0x1]
    %v52 = vld [vmem:[%s1 + $0x1] sm:$0x1]
    %vm53 = vcmask 261120
    %v54 = vsel %vm53, %v49, 0.0
    %55 = vadd.xlane.f32.xlu0 %v54
    %v56 = vpop.xlane.xlu0 %55
    %v57 = vsel %vm53, %v50, 0.0
    %58 = vadd.xlane.f32.xlu0 %v57
    %v59 = vpop.xlane.xlu0 %58
    %v60 = vrcp.pop 32.0
    %v61 = vmul.f32 %v56, %v60
    %v62 = vmul.f32 %v59, %v60
    %v63 = vsub.f32 %v49, %v61
    %v64 = vsub.f32 %v50, %v62
    %v65 = vmul.f32 %v63, %v63
    %v66 = vmul.f32 %v64, %v64
    %v67 = vsel %vm53, %v65, 0.0
    %68 = vadd.xlane.f32.xlu0 %v67
    %v69 = vpop.xlane.xlu0 %68
    %v70 = vsel %vm53, %v66, 0.0
    %71 = vadd.xlane.f32.xlu0 %v70
    %v72 = vpop.xlane.xlu0 %71
    %v73 = vmul.f32 %v69, %v60
    %v74 = vmul.f32 %v72, %v60
    %v75 = vadd.f32 %v73, 1e-12
    %v76 = vadd.f32 %v74, 1e-12
    %v77 = vrsqrt.pop %v75
    %v78 = vrsqrt.pop %v76
    %v79 = vmul.f32 %v63, %v77
    %v80 = vmul.f32 %v64, %v78
    %v81 = vlaneseq
    %v82 = vshrl.u32 %v81, 7
    %v83 = vsub.s32 0, %v82
    %v84 = vrot.slane %v51, %v83
    %v85 = vmul.f32 %v79, %v84
    %v86 = vmul.f32 %v80, %v84
    %v87 = vlaneseq
    %v88 = vshrl.u32 %v87, 7
    %v89 = vsub.s32 0, %v88
    %v90 = vrot.slane %v52, %v89
    %v91 = vadd.f32 %v85, %v90
    %v92 = vadd.f32 %v86, %v90
    %v93 = vld [vmem:[%s2] sm:$0x1]
    %v94 = vld [vmem:[%s2 + $0x1] sm:$0x1]
    %v95 = vpack.c.bf16 %v92, %v91
    %v96 = vld [vmem:[%s3] sm:$0xf]
    %v97 = vld [vmem:[%s3 + $0x4] sm:$0xf]
    %v98 = vld [vmem:[%s3 + $0x8] sm:$0xf]
    %v99 = vld [vmem:[%s3 + $0xc] sm:$0xf]
    %v100 = vld [vmem:[%s4] sm:$0x1]
    %v102 = vlaneseq
    %v103 = vshrl.u32 %v102, 7
    %v104 = vsub.s32 0, %v103
    %v105 = vrot.slane %v100, %v104
    %v111 = vunpack.c.l.b16 %v96
    %v112 = vunpack.c.l.b16 %v97
    %v113 = vunpack.c.l.b16 %v98
    %v114 = vunpack.c.l.b16 %v99
    %v115 = vpack.c.b16 %v112, %v111
    %v116 = vpack.c.b16 %v114, %v113
    %v120 = vsel %vm53, %v95, 0
    %122 = vmatprep.subr.bf16.mxu0 0
    %123 = vmatpush1.bf16.msra.mxu0 %v115
    %124 = vmatprep.subr.bf16.mxu0 0
    %125 = vmatpush1.bf16.msra.mxu0 %v116
    %126 = vmatprep.subr.bf16.mxu0 0
    %127 = vmatpush1.bf16.msra.mxu0 0
    %128 = vmatprep.subr.bf16.mxu0 0
    %129 = vmatpush1.bf16.msra.mxu0 0
    %130 = vmatprep.subr.bf16.mxu0 0
    %131 = vmatpush1.bf16.msra.mxu0 0
    %132 = vmatprep.subr.bf16.mxu0 0
    %133 = vmatpush1.bf16.msra.mxu0 0
    %134 = vmatprep.subr.bf16.mxu0 0
    %135 = vmatpush1.bf16.msra.mxu0 0
    %136 = vmatprep.subr.bf16.mxu0 0
    %137 = vmatpush1.bf16.msra.mxu0 0
    %138 = vmatprep.subr.bf16.mxu0 0
    %139 = vmatpush1.bf16.msra.mxu0 0
    %140 = vmatprep.subr.bf16.mxu0 0
    %141 = vmatpush1.bf16.msra.mxu0 0
    %142 = vmatprep.subr.bf16.mxu0 0
    %143 = vmatpush1.bf16.msra.mxu0 0
    %144 = vmatprep.subr.bf16.mxu0 0
    %145 = vmatpush1.bf16.msra.mxu0 0
    %146 = vmatprep.subr.bf16.mxu0 0
    %147 = vmatpush1.bf16.msra.mxu0 0
    %148 = vmatprep.subr.bf16.mxu0 0
    %149 = vmatpush1.bf16.msra.mxu0 0
    %150 = vmatprep.subr.bf16.mxu0 0
    %151 = vmatpush1.bf16.msra.mxu0 0
    %152 = vmatprep.subr.bf16.mxu0 0
    %153 = vmatpush1.bf16.msra.mxu0 0
    %154 = vmatprep.mubr.bf16.mxu0 0
    %155 = vmatmul.mubr.bf16.gmra.mrb[0].mxu0 %v120
    %v156 = vpop.f32.mrb[0].mxu0
    %v157 = vadd.f32 %v105, %v156
    %v158 = vpop.f32.mrb[0].mxu0
    %v159 = vpop.f32.mrb[0].mxu0
    %v160 = vadd.f32 %v105, %v159
    %v161 = vpop.f32.mrb[0].mxu0
    %162 = vdwg.mxu0
    %v163 = vpack.c.bf16 %v160, %v157
    %v165 = vunpack.c.l.b16 %v163
    %v166 = vunpack.c.h.b16 %v163
    %v167 = vpack.c.b16 %v165, %v165
    %v168 = vpack.c.b16 %v166, %v166
    %v169 = vld [vmem:[%s6] sm:$0x3f]
    %v170 = vld [vmem:[%s5] sm:$0xf]
    %v171 = vld [vmem:[%s5 + $0x4] sm:$0xf]
    %v172 = vld [vmem:[%s5 + $0x8] sm:$0xf]
    %v173 = vld [vmem:[%s5 + $0xc] sm:$0xf]
    %174 = vrot.lane.b32.xlu0 %v167, 96
    %v175 = vpop.permute.xlu0 %174
    %vm176 = vcmask 130048
    %v178 = vsel %vm176, %v167, 0
    %v181 = vsel %vm176, %v175, 0
    %183 = vmatprep.subr.bf16.mxu0 0
    %184 = vmatpush1.bf16.xpose.msra.mxu0 %v181
    %185 = vmatprep.subr.bf16.mxu0 0
    %186 = vmatpush1.bf16.xpose.msra.mxu0 0
    %187 = vmatprep.subr.bf16.mxu0 0
    %188 = vmatpush1.bf16.xpose.msra.mxu0 0
    %189 = vmatprep.subr.bf16.mxu0 0
    %190 = vmatpush1.bf16.xpose.msra.mxu0 0
    %191 = vmatprep.subr.bf16.mxu0 0
    %192 = vmatpush1.bf16.xpose.msra.mxu0 0
    %193 = vmatprep.subr.bf16.mxu0 0
    %194 = vmatpush1.bf16.xpose.msra.mxu0 0
    %195 = vmatprep.subr.bf16.mxu0 0
    %196 = vmatpush1.bf16.xpose.msra.mxu0 0
    %197 = vmatprep.subr.bf16.mxu0 0
    %198 = vmatpush1.bf16.xpose.msra.mxu0 0
    %199 = vmatprep.subr.bf16.mxu0 0
    %200 = vmatpush1.bf16.xpose.msra.mxu0 0
    %201 = vmatprep.subr.bf16.mxu0 0
    %202 = vmatpush1.bf16.xpose.msra.mxu0 0
    %203 = vmatprep.subr.bf16.mxu0 0
    %204 = vmatpush1.bf16.xpose.msra.mxu0 0
    %205 = vmatprep.subr.bf16.mxu0 0
    %206 = vmatpush1.bf16.xpose.msra.mxu0 0
    %207 = vmatprep.subr.bf16.mxu0 0
    %208 = vmatpush1.bf16.xpose.msra.mxu0 0
    %209 = vmatprep.subr.bf16.mxu0 0
    %210 = vmatpush1.bf16.xpose.msra.mxu0 0
    %211 = vmatprep.subr.bf16.mxu0 0
    %212 = vmatpush1.bf16.xpose.msra.mxu0 0
    %213 = vmatprep.subr.bf16.mxu0 0
    %214 = vmatpush1.bf16.xpose.msra.mxu0 0
    %215 = vmatprep.mubr.bf16.mxu0 0
    %216 = vmatmul.mubr.bf16.gmra.mrb[0].mxu0 %v178
    %v217 = vpop.f32.mrb[0].mxu0
    %v218 = vadd.f32 0.0, %v217
    %v219 = vpop.f32.mrb[0].mxu0
    %v220 = vpop.f32.mrb[0].mxu0
    %v221 = vpop.f32.mrb[0].mxu0
    %222 = vdwg.mxu0
    %223 = vrot.lane.b32.xlu0 %v168, 96
    %v224 = vpop.permute.xlu0 %223
    %v226 = vsel %vm176, %v168, 0
    %v229 = vsel %vm176, %v224, 0
    %231 = vmatprep.subr.bf16.mxu0 0
    %232 = vmatpush1.bf16.xpose.msra.mxu0 %v229
    %233 = vmatprep.subr.bf16.mxu0 0
    %234 = vmatpush1.bf16.xpose.msra.mxu0 0
    %235 = vmatprep.subr.bf16.mxu0 0
    %236 = vmatpush1.bf16.xpose.msra.mxu0 0
    %237 = vmatprep.subr.bf16.mxu0 0
    %238 = vmatpush1.bf16.xpose.msra.mxu0 0
    %239 = vmatprep.subr.bf16.mxu0 0
    %240 = vmatpush1.bf16.xpose.msra.mxu0 0
    %241 = vmatprep.subr.bf16.mxu0 0
    %242 = vmatpush1.bf16.xpose.msra.mxu0 0
    %243 = vmatprep.subr.bf16.mxu0 0
    %244 = vmatpush1.bf16.xpose.msra.mxu0 0
    %245 = vmatprep.subr.bf16.mxu0 0
    %246 = vmatpush1.bf16.xpose.msra.mxu0 0
    %247 = vmatprep.subr.bf16.mxu0 0
    %248 = vmatpush1.bf16.xpose.msra.mxu0 0
    %249 = vmatprep.subr.bf16.mxu0 0
    %250 = vmatpush1.bf16.xpose.msra.mxu0 0
    %251 = vmatprep.subr.bf16.mxu0 0
    %252 = vmatpush1.bf16.xpose.msra.mxu0 0
    %253 = vmatprep.subr.bf16.mxu0 0
    %254 = vmatpush1.bf16.xpose.msra.mxu0 0
    %255 = vmatprep.subr.bf16.mxu0 0
    %256 = vmatpush1.bf16.xpose.msra.mxu0 0
    %257 = vmatprep.subr.bf16.mxu0 0
    %258 = vmatpush1.bf16.xpose.msra.mxu0 0
    %259 = vmatprep.subr.bf16.mxu0 0
    %260 = vmatpush1.bf16.xpose.msra.mxu0 0
    %261 = vmatprep.subr.bf16.mxu0 0
    %262 = vmatpush1.bf16.xpose.msra.mxu0 0
    %263 = vmatprep.mubr.bf16.mxu0 0
    %264 = vmatmul.mubr.bf16.gmra.mrb[0].mxu0 %v226
    %v265 = vpop.f32.mrb[0].mxu0
    %v266 = vadd.f32 0.0, %v265
    %v267 = vpop.f32.mrb[0].mxu0
    %v268 = vpop.f32.mrb[0].mxu0
    %v269 = vpop.f32.mrb[0].mxu0
    %270 = vdwg.mxu0
    %v271 = vmul.f32 %v218, 0.25
    %v272 = vmul.f32 %v266, 0.25
    %v275 = vlaneseq
    %v276 = vshrl.u32 %v275, 7
    %v277 = vsub.s32 0, %v276
    %v278 = vrot.slane %v93, %v277
    %v279 = vlaneseq
    %v280 = vshrl.u32 %v279, 7
    %v281 = vsub.s32 0, %v280
    %v282 = vrot.slane %v94, %v281
    %v285 = vadd.f32 %v271, %v278
    %v286 = vadd.f32 %v272, %v282
    %vm287 = vcmask 64512
    %v288 = vsel %vm287, %v285, -inf
    %289 = vmax.xlane.f32.xlu0 %v288
    %v290 = vpop.xlane.xlu0 %289
    %v291 = vsel %vm287, %v286, -inf
    %292 = vmax.xlane.f32.xlu0 %v291
    %v293 = vpop.xlane.xlu0 %292
    %v294 = vsub.f32 %v285, %v290
    %v295 = vsub.f32 %v286, %v293
    %v296 = vmul.f32 %v294, 1.442695
    %v297 = vpow.pop %v296
    %v298 = vmul.f32 %v295, 1.442695
    %v299 = vpow.pop %v298
    %v300 = vsel %vm287, %v297, 0.0
    %301 = vadd.xlane.f32.xlu0 %v300
    %v302 = vpop.xlane.xlu0 %301
    %v303 = vsel %vm287, %v299, 0.0
    %304 = vadd.xlane.f32.xlu0 %v303
    %v305 = vpop.xlane.xlu0 %304
    %v306 = vrcp.pop %v302
    %v307 = vrcp.pop %v305
    %v308 = vmul.f32 %v297, %v306
    %v309 = vmul.f32 %v299, %v307
    %v310 = vpack.c.bf16 %v308, %v308
    %v311 = vpack.c.bf16 %v309, %v309
    %312 = vrot.lane.b32.xlu0 %v167, 64
    %v313 = vpop.permute.xlu0 %312
    %v315 = vsel %vm287, %v310, 0
    %vm317 = vcmask 1043456
    %v319 = vsel %vm317, %v313, 0
    %321 = vmatprep.subr.bf16.mxu0 0
    %322 = vmatpush1.bf16.msra.mxu0 %v319
    %323 = vmatprep.subr.bf16.mxu0 0
    %324 = vmatpush1.bf16.msra.mxu0 0
    %325 = vmatprep.subr.bf16.mxu0 0
    %326 = vmatpush1.bf16.msra.mxu0 0
    %327 = vmatprep.subr.bf16.mxu0 0
    %328 = vmatpush1.bf16.msra.mxu0 0
    %329 = vmatprep.subr.bf16.mxu0 0
    %330 = vmatpush1.bf16.msra.mxu0 0
    %331 = vmatprep.subr.bf16.mxu0 0
    %332 = vmatpush1.bf16.msra.mxu0 0
    %333 = vmatprep.subr.bf16.mxu0 0
    %334 = vmatpush1.bf16.msra.mxu0 0
    %335 = vmatprep.subr.bf16.mxu0 0
    %336 = vmatpush1.bf16.msra.mxu0 0
    %337 = vmatprep.subr.bf16.mxu0 0
    %338 = vmatpush1.bf16.msra.mxu0 0
    %339 = vmatprep.subr.bf16.mxu0 0
    %340 = vmatpush1.bf16.msra.mxu0 0
    %341 = vmatprep.subr.bf16.mxu0 0
    %342 = vmatpush1.bf16.msra.mxu0 0
    %343 = vmatprep.subr.bf16.mxu0 0
    %344 = vmatpush1.bf16.msra.mxu0 0
    %345 = vmatprep.subr.bf16.mxu0 0
    %346 = vmatpush1.bf16.msra.mxu0 0
    %347 = vmatprep.subr.bf16.mxu0 0
    %348 = vmatpush1.bf16.msra.mxu0 0
    %349 = vmatprep.subr.bf16.mxu0 0
    %350 = vmatpush1.bf16.msra.mxu0 0
    %351 = vmatprep.subr.bf16.mxu0 0
    %352 = vmatpush1.bf16.msra.mxu0 0
    %353 = vmatprep.mubr.bf16.mxu0 0
    %354 = vmatmul.mubr.bf16.gmra.mrb[0].mxu0 %v315
    %v355 = vpop.f32.mrb[0].mxu0
    %v356 = vadd.f32 0.0, %v355
    %v357 = vpop.f32.mrb[0].mxu0
    %v358 = vpop.f32.mrb[0].mxu0
    %v359 = vpop.f32.mrb[0].mxu0
    %360 = vdwg.mxu0
    %361 = vrot.lane.b32.xlu0 %v168, 64
    %v362 = vpop.permute.xlu0 %361
    %v364 = vsel %vm287, %v311, 0
    %v367 = vsel %vm317, %v362, 0
    %369 = vmatprep.subr.bf16.mxu0 0
    %370 = vmatpush1.bf16.msra.mxu0 %v367
    %371 = vmatprep.subr.bf16.mxu0 0
    %372 = vmatpush1.bf16.msra.mxu0 0
    %373 = vmatprep.subr.bf16.mxu0 0
    %374 = vmatpush1.bf16.msra.mxu0 0
    %375 = vmatprep.subr.bf16.mxu0 0
    %376 = vmatpush1.bf16.msra.mxu0 0
    %377 = vmatprep.subr.bf16.mxu0 0
    %378 = vmatpush1.bf16.msra.mxu0 0
    %379 = vmatprep.subr.bf16.mxu0 0
    %380 = vmatpush1.bf16.msra.mxu0 0
    %381 = vmatprep.subr.bf16.mxu0 0
    %382 = vmatpush1.bf16.msra.mxu0 0
    %383 = vmatprep.subr.bf16.mxu0 0
    %384 = vmatpush1.bf16.msra.mxu0 0
    %385 = vmatprep.subr.bf16.mxu0 0
    %386 = vmatpush1.bf16.msra.mxu0 0
    %387 = vmatprep.subr.bf16.mxu0 0
    %388 = vmatpush1.bf16.msra.mxu0 0
    %389 = vmatprep.subr.bf16.mxu0 0
    %390 = vmatpush1.bf16.msra.mxu0 0
    %391 = vmatprep.subr.bf16.mxu0 0
    %392 = vmatpush1.bf16.msra.mxu0 0
    %393 = vmatprep.subr.bf16.mxu0 0
    %394 = vmatpush1.bf16.msra.mxu0 0
    %395 = vmatprep.subr.bf16.mxu0 0
    %396 = vmatpush1.bf16.msra.mxu0 0
    %397 = vmatprep.subr.bf16.mxu0 0
    %398 = vmatpush1.bf16.msra.mxu0 0
    %399 = vmatprep.subr.bf16.mxu0 0
    %400 = vmatpush1.bf16.msra.mxu0 0
    %401 = vmatprep.mubr.bf16.mxu0 0
    %402 = vmatmul.mubr.bf16.gmra.mrb[0].mxu0 %v364
    %v403 = vpop.f32.mrb[0].mxu0
    %v404 = vadd.f32 0.0, %v403
    %v405 = vpop.f32.mrb[0].mxu0
    %v406 = vpop.f32.mrb[0].mxu0
    %v407 = vpop.f32.mrb[0].mxu0
    %408 = vdwg.mxu0
    %v409 = vpack.c.bf16 %v404, %v356
    %410 = vrot.lane.b32.xlu0 %v167, 112
    %v411 = vpop.permute.xlu0 %410
    %412 = vrot.lane.b32.xlu0 %v167, 80
    %v413 = vpop.permute.xlu0 %412
    %v415 = vsel %vm176, %v411, 0
    %v418 = vsel %vm176, %v413, 0
    %420 = vmatprep.subr.bf16.mxu0 0
    %421 = vmatpush1.bf16.xpose.msra.mxu0 %v418
    %422 = vmatprep.subr.bf16.mxu0 0
    %423 = vmatpush1.bf16.xpose.msra.mxu0 0
    %424 = vmatprep.subr.bf16.mxu0 0
    %425 = vmatpush1.bf16.xpose.msra.mxu0 0
    %426 = vmatprep.subr.bf16.mxu0 0
    %427 = vmatpush1.bf16.xpose.msra.mxu0 0
    %428 = vmatprep.subr.bf16.mxu0 0
    %429 = vmatpush1.bf16.xpose.msra.mxu0 0
    %430 = vmatprep.subr.bf16.mxu0 0
    %431 = vmatpush1.bf16.xpose.msra.mxu0 0
    %432 = vmatprep.subr.bf16.mxu0 0
    %433 = vmatpush1.bf16.xpose.msra.mxu0 0
    %434 = vmatprep.subr.bf16.mxu0 0
    %435 = vmatpush1.bf16.xpose.msra.mxu0 0
    %436 = vmatprep.subr.bf16.mxu0 0
    %437 = vmatpush1.bf16.xpose.msra.mxu0 0
    %438 = vmatprep.subr.bf16.mxu0 0
    %439 = vmatpush1.bf16.xpose.msra.mxu0 0
    %440 = vmatprep.subr.bf16.mxu0 0
    %441 = vmatpush1.bf16.xpose.msra.mxu0 0
    %442 = vmatprep.subr.bf16.mxu0 0
    %443 = vmatpush1.bf16.xpose.msra.mxu0 0
    %444 = vmatprep.subr.bf16.mxu0 0
    %445 = vmatpush1.bf16.xpose.msra.mxu0 0
    %446 = vmatprep.subr.bf16.mxu0 0
    %447 = vmatpush1.bf16.xpose.msra.mxu0 0
    %448 = vmatprep.subr.bf16.mxu0 0
    %449 = vmatpush1.bf16.xpose.msra.mxu0 0
    %450 = vmatprep.subr.bf16.mxu0 0
    %451 = vmatpush1.bf16.xpose.msra.mxu0 0
    %452 = vmatprep.mubr.bf16.mxu0 0
    %453 = vmatmul.mubr.bf16.gmra.mrb[0].mxu0 %v415
    %v454 = vpop.f32.mrb[0].mxu0
    %v455 = vadd.f32 0.0, %v454
    %v456 = vpop.f32.mrb[0].mxu0
    %v457 = vpop.f32.mrb[0].mxu0
    %v458 = vpop.f32.mrb[0].mxu0
    %459 = vdwg.mxu0
    %460 = vrot.lane.b32.xlu0 %v168, 112
    %v461 = vpop.permute.xlu0 %460
    %462 = vrot.lane.b32.xlu0 %v168, 80
    %v463 = vpop.permute.xlu0 %462
    %v465 = vsel %vm176, %v461, 0
    %v468 = vsel %vm176, %v463, 0
    %470 = vmatprep.subr.bf16.mxu0 0
    %471 = vmatpush1.bf16.xpose.msra.mxu0 %v468
    %472 = vmatprep.subr.bf16.mxu0 0
    %473 = vmatpush1.bf16.xpose.msra.mxu0 0
    %474 = vmatprep.subr.bf16.mxu0 0
    %475 = vmatpush1.bf16.xpose.msra.mxu0 0
    %476 = vmatprep.subr.bf16.mxu0 0
    %477 = vmatpush1.bf16.xpose.msra.mxu0 0
    %478 = vmatprep.subr.bf16.mxu0 0
    %479 = vmatpush1.bf16.xpose.msra.mxu0 0
    %480 = vmatprep.subr.bf16.mxu0 0
    %481 = vmatpush1.bf16.xpose.msra.mxu0 0
    %482 = vmatprep.subr.bf16.mxu0 0
    %483 = vmatpush1.bf16.xpose.msra.mxu0 0
    %484 = vmatprep.subr.bf16.mxu0 0
    %485 = vmatpush1.bf16.xpose.msra.mxu0 0
    %486 = vmatprep.subr.bf16.mxu0 0
    %487 = vmatpush1.bf16.xpose.msra.mxu0 0
    %488 = vmatprep.subr.bf16.mxu0 0
    %489 = vmatpush1.bf16.xpose.msra.mxu0 0
    %490 = vmatprep.subr.bf16.mxu0 0
    %491 = vmatpush1.bf16.xpose.msra.mxu0 0
    %492 = vmatprep.subr.bf16.mxu0 0
    %493 = vmatpush1.bf16.xpose.msra.mxu0 0
    %494 = vmatprep.subr.bf16.mxu0 0
    %495 = vmatpush1.bf16.xpose.msra.mxu0 0
    %496 = vmatprep.subr.bf16.mxu0 0
    %497 = vmatpush1.bf16.xpose.msra.mxu0 0
    %498 = vmatprep.subr.bf16.mxu0 0
    %499 = vmatpush1.bf16.xpose.msra.mxu0 0
    %500 = vmatprep.subr.bf16.mxu0 0
    %501 = vmatpush1.bf16.xpose.msra.mxu0 0
    %502 = vmatprep.mubr.bf16.mxu0 0
    %503 = vmatmul.mubr.bf16.gmra.mrb[0].mxu0 %v465
    %v504 = vpop.f32.mrb[0].mxu0
    %v505 = vadd.f32 0.0, %v504
    %v506 = vpop.f32.mrb[0].mxu0
    %v507 = vpop.f32.mrb[0].mxu0
    %v508 = vpop.f32.mrb[0].mxu0
    %509 = vdwg.mxu0
    %v510 = vmul.f32 %v455, 0.25
    %v511 = vmul.f32 %v505, 0.25
    %v512 = vadd.f32 %v510, %v278
    %v513 = vadd.f32 %v511, %v282
    %v514 = vsel %vm287, %v512, -inf
    %515 = vmax.xlane.f32.xlu0 %v514
    %v516 = vpop.xlane.xlu0 %515
    %v517 = vsel %vm287, %v513, -inf
    %518 = vmax.xlane.f32.xlu0 %v517
    %v519 = vpop.xlane.xlu0 %518
    %v520 = vsub.f32 %v512, %v516
    %v521 = vsub.f32 %v513, %v519
    %v522 = vmul.f32 %v520, 1.442695
    %v523 = vpow.pop %v522
    %v524 = vmul.f32 %v521, 1.442695
    %v525 = vpow.pop %v524
    %v526 = vsel %vm287, %v523, 0.0
    %527 = vadd.xlane.f32.xlu0 %v526
    %v528 = vpop.xlane.xlu0 %527
    %v529 = vsel %vm287, %v525, 0.0
    %530 = vadd.xlane.f32.xlu0 %v529
    %v531 = vpop.xlane.xlu0 %530
    %v532 = vrcp.pop %v528
    %v533 = vrcp.pop %v531
    %v534 = vmul.f32 %v523, %v532
    %v535 = vmul.f32 %v525, %v533
    %v536 = vpack.c.bf16 %v534, %v534
    %v537 = vpack.c.bf16 %v535, %v535
    %538 = vrot.lane.b32.xlu0 %v167, 48
    %v539 = vpop.permute.xlu0 %538
    %v541 = vsel %vm287, %v536, 0
    %v544 = vsel %vm317, %v539, 0
    %546 = vmatprep.subr.bf16.mxu0 0
    %547 = vmatpush1.bf16.msra.mxu0 %v544
    %548 = vmatprep.subr.bf16.mxu0 0
    %549 = vmatpush1.bf16.msra.mxu0 0
    %550 = vmatprep.subr.bf16.mxu0 0
    %551 = vmatpush1.bf16.msra.mxu0 0
    %552 = vmatprep.subr.bf16.mxu0 0
    %553 = vmatpush1.bf16.msra.mxu0 0
    %554 = vmatprep.subr.bf16.mxu0 0
    %555 = vmatpush1.bf16.msra.mxu0 0
    %556 = vmatprep.subr.bf16.mxu0 0
    %557 = vmatpush1.bf16.msra.mxu0 0
    %558 = vmatprep.subr.bf16.mxu0 0
    %559 = vmatpush1.bf16.msra.mxu0 0
    %560 = vmatprep.subr.bf16.mxu0 0
    %561 = vmatpush1.bf16.msra.mxu0 0
    %562 = vmatprep.subr.bf16.mxu0 0
    %563 = vmatpush1.bf16.msra.mxu0 0
    %564 = vmatprep.subr.bf16.mxu0 0
    %565 = vmatpush1.bf16.msra.mxu0 0
    %566 = vmatprep.subr.bf16.mxu0 0
    %567 = vmatpush1.bf16.msra.mxu0 0
    %568 = vmatprep.subr.bf16.mxu0 0
    %569 = vmatpush1.bf16.msra.mxu0 0
    %570 = vmatprep.subr.bf16.mxu0 0
    %571 = vmatpush1.bf16.msra.mxu0 0
    %572 = vmatprep.subr.bf16.mxu0 0
    %573 = vmatpush1.bf16.msra.mxu0 0
    %574 = vmatprep.subr.bf16.mxu0 0
    %575 = vmatpush1.bf16.msra.mxu0 0
    %576 = vmatprep.subr.bf16.mxu0 0
    %577 = vmatpush1.bf16.msra.mxu0 0
    %578 = vmatprep.mubr.bf16.mxu0 0
    %579 = vmatmul.mubr.bf16.gmra.mrb[0].mxu0 %v541
    %v580 = vpop.f32.mrb[0].mxu0
    %v581 = vadd.f32 0.0, %v580
    %v582 = vpop.f32.mrb[0].mxu0
    %v583 = vpop.f32.mrb[0].mxu0
    %v584 = vpop.f32.mrb[0].mxu0
    %585 = vdwg.mxu0
    %586 = vrot.lane.b32.xlu0 %v168, 48
    %v587 = vpop.permute.xlu0 %586
    %v589 = vsel %vm287, %v537, 0
    %v592 = vsel %vm317, %v587, 0
    %594 = vmatprep.subr.bf16.mxu0 0
    %595 = vmatpush1.bf16.msra.mxu0 %v592
    %596 = vmatprep.subr.bf16.mxu0 0
    %597 = vmatpush1.bf16.msra.mxu0 0
    %598 = vmatprep.subr.bf16.mxu0 0
    %599 = vmatpush1.bf16.msra.mxu0 0
    %600 = vmatprep.subr.bf16.mxu0 0
    %601 = vmatpush1.bf16.msra.mxu0 0
    %602 = vmatprep.subr.bf16.mxu0 0
    %603 = vmatpush1.bf16.msra.mxu0 0
    %604 = vmatprep.subr.bf16.mxu0 0
    %605 = vmatpush1.bf16.msra.mxu0 0
    %606 = vmatprep.subr.bf16.mxu0 0
    %607 = vmatpush1.bf16.msra.mxu0 0
    %608 = vmatprep.subr.bf16.mxu0 0
    %609 = vmatpush1.bf16.msra.mxu0 0
    %610 = vmatprep.subr.bf16.mxu0 0
    %611 = vmatpush1.bf16.msra.mxu0 0
    %612 = vmatprep.subr.bf16.mxu0 0
    %613 = vmatpush1.bf16.msra.mxu0 0
    %614 = vmatprep.subr.bf16.mxu0 0
    %615 = vmatpush1.bf16.msra.mxu0 0
    %616 = vmatprep.subr.bf16.mxu0 0
    %617 = vmatpush1.bf16.msra.mxu0 0
    %618 = vmatprep.subr.bf16.mxu0 0
    %619 = vmatpush1.bf16.msra.mxu0 0
    %620 = vmatprep.subr.bf16.mxu0 0
    %621 = vmatpush1.bf16.msra.mxu0 0
    %622 = vmatprep.subr.bf16.mxu0 0
    %623 = vmatpush1.bf16.msra.mxu0 0
    %624 = vmatprep.subr.bf16.mxu0 0
    %625 = vmatpush1.bf16.msra.mxu0 0
    %626 = vmatprep.mubr.bf16.mxu0 0
    %627 = vmatmul.mubr.bf16.gmra.mrb[0].mxu0 %v589
    %v628 = vpop.f32.mrb[0].mxu0
    %v629 = vadd.f32 0.0, %v628
    %v630 = vpop.f32.mrb[0].mxu0
    %v631 = vpop.f32.mrb[0].mxu0
    %v632 = vpop.f32.mrb[0].mxu0
    %633 = vdwg.mxu0
    %v634 = vpack.c.bf16 %v629, %v581
    %v637 = vunpack.c.l.b16 %v172
    %v638 = vunpack.c.l.b16 %v173
    %v639 = vpack.c.b16 %v638, %v637
    %v642 = vsel %vm176, %v634, 0
    %644 = vmatprep.subr.bf16.mxu0 0
    %645 = vmatpush1.bf16.msra.mxu0 %v639
    %646 = vmatprep.subr.bf16.mxu0 0
    %647 = vmatpush1.bf16.msra.mxu0 0
    %648 = vmatprep.subr.bf16.mxu0 0
    %649 = vmatpush1.bf16.msra.mxu0 0
    %650 = vmatprep.subr.bf16.mxu0 0
    %651 = vmatpush1.bf16.msra.mxu0 0
    %652 = vmatprep.subr.bf16.mxu0 0
    %653 = vmatpush1.bf16.msra.mxu0 0
    %654 = vmatprep.subr.bf16.mxu0 0
    %655 = vmatpush1.bf16.msra.mxu0 0
    %656 = vmatprep.subr.bf16.mxu0 0
    %657 = vmatpush1.bf16.msra.mxu0 0
    %658 = vmatprep.subr.bf16.mxu0 0
    %659 = vmatpush1.bf16.msra.mxu0 0
    %660 = vmatprep.subr.bf16.mxu0 0
    %661 = vmatpush1.bf16.msra.mxu0 0
    %662 = vmatprep.subr.bf16.mxu0 0
    %663 = vmatpush1.bf16.msra.mxu0 0
    %664 = vmatprep.subr.bf16.mxu0 0
    %665 = vmatpush1.bf16.msra.mxu0 0
    %666 = vmatprep.subr.bf16.mxu0 0
    %667 = vmatpush1.bf16.msra.mxu0 0
    %668 = vmatprep.subr.bf16.mxu0 0
    %669 = vmatpush1.bf16.msra.mxu0 0
    %670 = vmatprep.subr.bf16.mxu0 0
    %671 = vmatpush1.bf16.msra.mxu0 0
    %672 = vmatprep.subr.bf16.mxu0 0
    %673 = vmatpush1.bf16.msra.mxu0 0
    %674 = vmatprep.subr.bf16.mxu0 0
    %675 = vmatpush1.bf16.msra.mxu0 0
    %676 = vmatprep.mubr.bf16.mxu0 0
    %677 = vmatmul.mubr.bf16.gmra.mrb[0].mxu0 %v642
    %v678 = vpop.f32.mrb[0].mxu0
    %v679 = vadd.f32 0.0, %v678
    %v680 = vpop.f32.mrb[0].mxu0
    %v681 = vpop.f32.mrb[0].mxu0
    %v682 = vadd.f32 0.0, %v681
    %v683 = vpop.f32.mrb[0].mxu0
    %684 = vdwg.mxu0
    %v687 = vunpack.c.l.b16 %v170
    %v688 = vunpack.c.l.b16 %v171
    %v689 = vpack.c.b16 %v688, %v687
    %v692 = vsel %vm176, %v409, 0
    %694 = vmatprep.subr.bf16.mxu0 0
    %695 = vmatpush1.bf16.msra.mxu0 %v689
    %696 = vmatprep.subr.bf16.mxu0 0
    %697 = vmatpush1.bf16.msra.mxu0 0
    %698 = vmatprep.subr.bf16.mxu0 0
    %699 = vmatpush1.bf16.msra.mxu0 0
    %700 = vmatprep.subr.bf16.mxu0 0
    %701 = vmatpush1.bf16.msra.mxu0 0
    %702 = vmatprep.subr.bf16.mxu0 0
    %703 = vmatpush1.bf16.msra.mxu0 0
    %704 = vmatprep.subr.bf16.mxu0 0
    %705 = vmatpush1.bf16.msra.mxu0 0
    %706 = vmatprep.subr.bf16.mxu0 0
    %707 = vmatpush1.bf16.msra.mxu0 0
    %708 = vmatprep.subr.bf16.mxu0 0
    %709 = vmatpush1.bf16.msra.mxu0 0
    %710 = vmatprep.subr.bf16.mxu0 0
    %711 = vmatpush1.bf16.msra.mxu0 0
    %712 = vmatprep.subr.bf16.mxu0 0
    %713 = vmatpush1.bf16.msra.mxu0 0
    %714 = vmatprep.subr.bf16.mxu0 0
    %715 = vmatpush1.bf16.msra.mxu0 0
    %716 = vmatprep.subr.bf16.mxu0 0
    %717 = vmatpush1.bf16.msra.mxu0 0
    %718 = vmatprep.subr.bf16.mxu0 0
    %719 = vmatpush1.bf16.msra.mxu0 0
    %720 = vmatprep.subr.bf16.mxu0 0
    %721 = vmatpush1.bf16.msra.mxu0 0
    %722 = vmatprep.subr.bf16.mxu0 0
    %723 = vmatpush1.bf16.msra.mxu0 0
    %724 = vmatprep.subr.bf16.mxu0 0
    %725 = vmatpush1.bf16.msra.mxu0 0
    %726 = vmatprep.mubr.bf16.mxu0 0
    %727 = vmatmul.mubr.bf16.gmra.mrb[0].mxu0 %v692
    %v728 = vpop.f32.mrb[0].mxu0
    %v729 = vadd.f32 %v679, %v728
    %v730 = vpop.f32.mrb[0].mxu0
    %v731 = vpop.f32.mrb[0].mxu0
    %v732 = vadd.f32 %v682, %v731
    %v733 = vpop.f32.mrb[0].mxu0
    %734 = vdwg.mxu0
    %v735 = vadd.f32 %v91, %v729
    %v736 = vadd.f32 %v92, %v732
    %v737 = vlaneseq
    %v738 = vshrl.u32 %v737, 7
    %v739 = vsub.s32 0, %v738
    %v740 = vrot.slane %v169, %v739
    %v741 = vadd.f32 %v735, %v740
    %v742 = vadd.f32 %v736, %v740
    %v743 = vsel %vm53, %v741, 0.0
    %744 = vadd.xlane.f32.xlu0 %v743
    %v745 = vpop.xlane.xlu0 %744
    %v746 = vsel %vm53, %v742, 0.0
    %747 = vadd.xlane.f32.xlu0 %v746
    %v748 = vpop.xlane.xlu0 %747
    %v749 = vmul.f32 %v745, %v60
    %v750 = vmul.f32 %v748, %v60
    %v751 = vsub.f32 %v741, %v749
    %v752 = vsub.f32 %v742, %v750
    %v753 = vmul.f32 %v751, %v751
    %v754 = vmul.f32 %v752, %v752
    %v755 = vsel %vm53, %v753, 0.0
    %756 = vadd.xlane.f32.xlu0 %v755
    %v757 = vpop.xlane.xlu0 %756
    %v758 = vsel %vm53, %v754, 0.0
    %759 = vadd.xlane.f32.xlu0 %v758
    %v760 = vpop.xlane.xlu0 %759
    %v761 = vmul.f32 %v757, %v60
    %v762 = vmul.f32 %v760, %v60
    %v763 = vadd.f32 %v761, 1e-12
    %v764 = vadd.f32 %v762, 1e-12
    %v765 = vrsqrt.pop %v763
    %v766 = vrsqrt.pop %v764
    %v767 = vmul.f32 %v751, %v765
    %v768 = vmul.f32 %v752, %v766
    %v769 = vlaneseq
    %v770 = vshrl.u32 %v769, 7
    %v771 = vsub.s32 1, %v770
    %v772 = vrot.slane %v169, %v771
    %v773 = vmul.f32 %v767, %v772
    %v774 = vmul.f32 %v768, %v772
    %v775 = vlaneseq
    %v776 = vshrl.u32 %v775, 7
    %v777 = vsub.s32 2, %v776
    %v778 = vrot.slane %v169, %v777
    %v779 = vadd.f32 %v773, %v778
    %v780 = vadd.f32 %v774, %v778
    %v781 = vpack.c.bf16 %v780, %v779
    %v782 = vld [vmem:[%s7] sm:$0xf]
    %v783 = vld [vmem:[%s7 + $0x4] sm:$0xf]
    %v784 = vld [vmem:[%s7 + $0x8] sm:$0xf]
    %v785 = vld [vmem:[%s7 + $0xc] sm:$0xf]
    %v786 = vld [vmem:[%s8] sm:$0x1]
    %v788 = vlaneseq
    %v789 = vshrl.u32 %v788, 7
    %v790 = vsub.s32 0, %v789
    %v791 = vrot.slane %v786, %v790
    %v797 = vunpack.c.l.b16 %v782
    %v798 = vunpack.c.l.b16 %v783
    %v799 = vunpack.c.l.b16 %v784
    %v800 = vunpack.c.l.b16 %v785
    %v801 = vpack.c.b16 %v798, %v797
    %v802 = vpack.c.b16 %v800, %v799
    %v806 = vsel %vm53, %v781, 0
    %808 = vmatprep.subr.bf16.mxu0 0
    %809 = vmatpush1.bf16.msra.mxu0 %v801
    %810 = vmatprep.subr.bf16.mxu0 0
    %811 = vmatpush1.bf16.msra.mxu0 %v802
    %812 = vmatprep.subr.bf16.mxu0 0
    %813 = vmatpush1.bf16.msra.mxu0 0
    %814 = vmatprep.subr.bf16.mxu0 0
    %815 = vmatpush1.bf16.msra.mxu0 0
    %816 = vmatprep.subr.bf16.mxu0 0
    %817 = vmatpush1.bf16.msra.mxu0 0
    %818 = vmatprep.subr.bf16.mxu0 0
    %819 = vmatpush1.bf16.msra.mxu0 0
    %820 = vmatprep.subr.bf16.mxu0 0
    %821 = vmatpush1.bf16.msra.mxu0 0
    %822 = vmatprep.subr.bf16.mxu0 0
    %823 = vmatpush1.bf16.msra.mxu0 0
    %824 = vmatprep.subr.bf16.mxu0 0
    %825 = vmatpush1.bf16.msra.mxu0 0
    %826 = vmatprep.subr.bf16.mxu0 0
    %827 = vmatpush1.bf16.msra.mxu0 0
    %828 = vmatprep.subr.bf16.mxu0 0
    %829 = vmatpush1.bf16.msra.mxu0 0
    %830 = vmatprep.subr.bf16.mxu0 0
    %831 = vmatpush1.bf16.msra.mxu0 0
    %832 = vmatprep.subr.bf16.mxu0 0
    %833 = vmatpush1.bf16.msra.mxu0 0
    %834 = vmatprep.subr.bf16.mxu0 0
    %835 = vmatpush1.bf16.msra.mxu0 0
    %836 = vmatprep.subr.bf16.mxu0 0
    %837 = vmatpush1.bf16.msra.mxu0 0
    %838 = vmatprep.subr.bf16.mxu0 0
    %839 = vmatpush1.bf16.msra.mxu0 0
    %840 = vmatprep.mubr.bf16.mxu0 0
    %841 = vmatmul.mubr.bf16.gmra.mrb[0].mxu0 %v806
    %v842 = vpop.f32.mrb[0].mxu0
    %v843 = vadd.f32 %v791, %v842
    %v844 = vpop.f32.mrb[0].mxu0
    %v845 = vpop.f32.mrb[0].mxu0
    %v846 = vadd.f32 %v791, %v845
    %v847 = vpop.f32.mrb[0].mxu0
    %848 = vdwg.mxu0
    %v849 = vmul.f32 %v843, %v843
    %v850 = vmul.f32 %v846, %v846
    %v851 = vmul.f32 %v843, %v849
    %v852 = vmul.f32 %v846, %v850
    %v853 = vmul.f32 %v851, 0.044715
    %v854 = vmul.f32 %v852, 0.044715
    %v855 = vadd.f32 %v843, %v853
    %v856 = vadd.f32 %v846, %v854
    %v857 = vmul.f32 %v855, 0.7978846
    %v858 = vmul.f32 %v856, 0.7978846
    %v859 = vtanh.pop %v857
    %v860 = vtanh.pop %v858
    %v861 = vadd.f32 %v859, 1.0
    %v862 = vadd.f32 %v860, 1.0
    %v863 = vmul.f32 %v861, 0.5
    %v864 = vmul.f32 %v862, 0.5
    %v865 = vmul.f32 %v843, %v863
    %v866 = vmul.f32 %v846, %v864
    %v867 = vpack.c.bf16 %v866, %v865
    %v868 = vld [vmem:[%s9] sm:$0xf]
    %v869 = vld [vmem:[%s9 + $0x4] sm:$0xf]
    %v870 = vld [vmem:[%s9 + $0x8] sm:$0xf]
    %v871 = vld [vmem:[%s9 + $0xc] sm:$0xf]
    %v872 = vld [vmem:[%s9 + $0x10] sm:$0xf]
    %v873 = vld [vmem:[%s9 + $0x14] sm:$0xf]
    %v874 = vld [vmem:[%s9 + $0x18] sm:$0xf]
    %v875 = vld [vmem:[%s9 + $0x1c] sm:$0xf]
    %v876 = vld [vmem:[%s9 + $0x20] sm:$0xf]
    %v877 = vld [vmem:[%s9 + $0x24] sm:$0xf]
    %v878 = vld [vmem:[%s9 + $0x28] sm:$0xf]
    %v879 = vld [vmem:[%s9 + $0x2c] sm:$0xf]
    %v880 = vld [vmem:[%s9 + $0x30] sm:$0xf]
    %v881 = vld [vmem:[%s9 + $0x34] sm:$0xf]
    %v882 = vld [vmem:[%s9 + $0x38] sm:$0xf]
    %v883 = vld [vmem:[%s9 + $0x3c] sm:$0xf]
    %v884 = vlaneseq
    %v885 = vshrl.u32 %v884, 7
    %v886 = vsub.s32 5, %v885
    %v887 = vrot.slane %v169, %v886
    %v904 = vunpack.c.l.b16 %v868
    %v905 = vunpack.c.l.b16 %v869
    %v906 = vunpack.c.l.b16 %v870
    %v907 = vunpack.c.l.b16 %v871
    %v908 = vunpack.c.l.b16 %v872
    %v909 = vunpack.c.l.b16 %v873
    %v910 = vunpack.c.l.b16 %v874
    %v911 = vunpack.c.l.b16 %v875
    %v912 = vunpack.c.l.b16 %v876
    %v913 = vunpack.c.l.b16 %v877
    %v914 = vunpack.c.l.b16 %v878
    %v915 = vunpack.c.l.b16 %v879
    %v916 = vunpack.c.l.b16 %v880
    %v917 = vunpack.c.l.b16 %v881
    %v918 = vunpack.c.l.b16 %v882
    %v919 = vunpack.c.l.b16 %v883
    %v920 = vpack.c.b16 %v905, %v904
    %v921 = vpack.c.b16 %v907, %v906
    %v922 = vpack.c.b16 %v909, %v908
    %v923 = vpack.c.b16 %v911, %v910
    %v924 = vpack.c.b16 %v913, %v912
    %v925 = vpack.c.b16 %v915, %v914
    %v926 = vpack.c.b16 %v917, %v916
    %v927 = vpack.c.b16 %v919, %v918
    %936 = vmatprep.subr.bf16.mxu0 0
    %937 = vmatpush1.bf16.msra.mxu0 %v920
    %938 = vmatprep.subr.bf16.mxu0 0
    %939 = vmatpush1.bf16.msra.mxu0 %v921
    %940 = vmatprep.subr.bf16.mxu0 0
    %941 = vmatpush1.bf16.msra.mxu0 %v922
    %942 = vmatprep.subr.bf16.mxu0 0
    %943 = vmatpush1.bf16.msra.mxu0 %v923
    %944 = vmatprep.subr.bf16.mxu0 0
    %945 = vmatpush1.bf16.msra.mxu0 %v924
    %946 = vmatprep.subr.bf16.mxu0 0
    %947 = vmatpush1.bf16.msra.mxu0 %v925
    %948 = vmatprep.subr.bf16.mxu0 0
    %949 = vmatpush1.bf16.msra.mxu0 %v926
    %950 = vmatprep.subr.bf16.mxu0 0
    %951 = vmatpush1.bf16.msra.mxu0 %v927
    %952 = vmatprep.subr.bf16.mxu0 0
    %953 = vmatpush1.bf16.msra.mxu0 0
    %954 = vmatprep.subr.bf16.mxu0 0
    %955 = vmatpush1.bf16.msra.mxu0 0
    %956 = vmatprep.subr.bf16.mxu0 0
    %957 = vmatpush1.bf16.msra.mxu0 0
    %958 = vmatprep.subr.bf16.mxu0 0
    %959 = vmatpush1.bf16.msra.mxu0 0
    %960 = vmatprep.subr.bf16.mxu0 0
    %961 = vmatpush1.bf16.msra.mxu0 0
    %962 = vmatprep.subr.bf16.mxu0 0
    %963 = vmatpush1.bf16.msra.mxu0 0
    %964 = vmatprep.subr.bf16.mxu0 0
    %965 = vmatpush1.bf16.msra.mxu0 0
    %966 = vmatprep.subr.bf16.mxu0 0
    %967 = vmatpush1.bf16.msra.mxu0 0
    %968 = vmatprep.mubr.bf16.mxu0 0
    %969 = vmatmul.mubr.bf16.gmra.mrb[0].mxu0 %v867
    %v970 = vpop.f32.mrb[0].mxu0
    %v971 = vadd.f32 %v887, %v970
    %v972 = vpop.f32.mrb[0].mxu0
    %v973 = vpop.f32.mrb[0].mxu0
    %v974 = vadd.f32 %v887, %v973
    %v975 = vpop.f32.mrb[0].mxu0
    %976 = vdwg.mxu0
    %v977 = vadd.f32 %v779, %v971
    %v978 = vadd.f32 %v780, %v974
    %v979 = vsel %vm53, %v977, 0.0
    %980 = vadd.xlane.f32.xlu0 %v979
    %v981 = vpop.xlane.xlu0 %980
    %v982 = vsel %vm53, %v978, 0.0
    %983 = vadd.xlane.f32.xlu0 %v982
    %v984 = vpop.xlane.xlu0 %983
    %v985 = vmul.f32 %v981, %v60
    %v986 = vmul.f32 %v984, %v60
    %v987 = vsub.f32 %v977, %v985
    %v988 = vsub.f32 %v978, %v986
    %v989 = vmul.f32 %v987, %v987
    %v990 = vmul.f32 %v988, %v988
    %v991 = vsel %vm53, %v989, 0.0
    %992 = vadd.xlane.f32.xlu0 %v991
    %v993 = vpop.xlane.xlu0 %992
    %v994 = vsel %vm53, %v990, 0.0
    %995 = vadd.xlane.f32.xlu0 %v994
    %v996 = vpop.xlane.xlu0 %995
    %v997 = vmul.f32 %v993, %v60
    %v998 = vmul.f32 %v996, %v60
    %v999 = vadd.f32 %v997, 1e-12
    %v1000 = vadd.f32 %v998, 1e-12
    %v1001 = vrsqrt.pop %v999
    %v1002 = vrsqrt.pop %v1000
    %v1003 = vmul.f32 %v987, %v1001
    %v1004 = vmul.f32 %v988, %v1002
    %v1005 = vlaneseq
    %v1006 = vshrl.u32 %v1005, 7
    %v1007 = vsub.s32 3, %v1006
    %v1008 = vrot.slane %v169, %v1007
    %v1009 = vmul.f32 %v1003, %v1008
    %v1010 = vmul.f32 %v1004, %v1008
    %v1011 = vlaneseq
    %v1012 = vshrl.u32 %v1011, 7
    %v1013 = vsub.s32 4, %v1012
    %v1014 = vrot.slane %v169, %v1013
    %v1015 = vadd.f32 %v1009, %v1014
    %v1016 = vadd.f32 %v1010, %v1014
    %v1017 = vpack.c.bf16 %v1016, %v1015
    %s1018 = scalar_lea.vmem %s3, 16
    %v1019 = vld [vmem:[%s1018] sm:$0xf]
    %v1020 = vld [vmem:[%s1018 + $0x4] sm:$0xf]
    %v1021 = vld [vmem:[%s1018 + $0x8] sm:$0xf]
    %v1022 = vld [vmem:[%s1018 + $0xc] sm:$0xf]
    %s1023 = scalar_lea.vmem %s4, 1
    %v1024 = vld [vmem:[%s1023] sm:$0x1]
    %v1026 = vlaneseq
    %v1027 = vshrl.u32 %v1026, 7
    %v1028 = vsub.s32 0, %v1027
    %v1029 = vrot.slane %v1024, %v1028
    %v1035 = vunpack.c.l.b16 %v1019
    %v1036 = vunpack.c.l.b16 %v1020
    %v1037 = vunpack.c.l.b16 %v1021
    %v1038 = vunpack.c.l.b16 %v1022
    %v1039 = vpack.c.b16 %v1036, %v1035
    %v1040 = vpack.c.b16 %v1038, %v1037
    %v1044 = vsel %vm53, %v1017, 0
    %1046 = vmatprep.subr.bf16.mxu0 0
    %1047 = vmatpush1.bf16.msra.mxu0 %v1039
    %1048 = vmatprep.subr.bf16.mxu0 0
    %1049 = vmatpush1.bf16.msra.mxu0 %v1040
    %1050 = vmatprep.subr.bf16.mxu0 0
    %1051 = vmatpush1.bf16.msra.mxu0 0
    %1052 = vmatprep.subr.bf16.mxu0 0
    %1053 = vmatpush1.bf16.msra.mxu0 0
    %1054 = vmatprep.subr.bf16.mxu0 0
    %1055 = vmatpush1.bf16.msra.mxu0 0
    %1056 = vmatprep.subr.bf16.mxu0 0
    %1057 = vmatpush1.bf16.msra.mxu0 0
    %1058 = vmatprep.subr.bf16.mxu0 0
    %1059 = vmatpush1.bf16.msra.mxu0 0
    %1060 = vmatprep.subr.bf16.mxu0 0
    %1061 = vmatpush1.bf16.msra.mxu0 0
    %1062 = vmatprep.subr.bf16.mxu0 0
    %1063 = vmatpush1.bf16.msra.mxu0 0
    %1064 = vmatprep.subr.bf16.mxu0 0
    %1065 = vmatpush1.bf16.msra.mxu0 0
    %1066 = vmatprep.subr.bf16.mxu0 0
    %1067 = vmatpush1.bf16.msra.mxu0 0
    %1068 = vmatprep.subr.bf16.mxu0 0
    %1069 = vmatpush1.bf16.msra.mxu0 0
    %1070 = vmatprep.subr.bf16.mxu0 0
    %1071 = vmatpush1.bf16.msra.mxu0 0
    %1072 = vmatprep.subr.bf16.mxu0 0
    %1073 = vmatpush1.bf16.msra.mxu0 0
    %1074 = vmatprep.subr.bf16.mxu0 0
    %1075 = vmatpush1.bf16.msra.mxu0 0
    %1076 = vmatprep.subr.bf16.mxu0 0
    %1077 = vmatpush1.bf16.msra.mxu0 0
    %1078 = vmatprep.mubr.bf16.mxu0 0
    %1079 = vmatmul.mubr.bf16.gmra.mrb[0].mxu0 %v1044
    %v1080 = vpop.f32.mrb[0].mxu0
    %v1081 = vadd.f32 %v1029, %v1080
    %v1082 = vpop.f32.mrb[0].mxu0
    %v1083 = vpop.f32.mrb[0].mxu0
    %v1084 = vadd.f32 %v1029, %v1083
    %v1085 = vpop.f32.mrb[0].mxu0
    %1086 = vdwg.mxu0
    %v1087 = vpack.c.bf16 %v1084, %v1081
    %v1089 = vunpack.c.l.b16 %v1087
    %v1090 = vunpack.c.h.b16 %v1087
    %v1091 = vpack.c.b16 %v1089, %v1089
    %v1092 = vpack.c.b16 %v1090, %v1090
    %s1093 = scalar_lea.vmem %s6, 8
    %v1094 = vld [vmem:[%s1093] sm:$0x3f]
    %s1095 = scalar_lea.vmem %s5, 16
    %v1096 = vld [vmem:[%s1095] sm:$0xf]
    %v1097 = vld [vmem:[%s1095 + $0x4] sm:$0xf]
    %v1098 = vld [vmem:[%s1095 + $0x8] sm:$0xf]
    %v1099 = vld [vmem:[%s1095 + $0xc] sm:$0xf]
    %1100 = vrot.lane.b32.xlu0 %v1091, 96
    %v1101 = vpop.permute.xlu0 %1100
    %v1103 = vsel %vm176, %v1091, 0
    %v1106 = vsel %vm176, %v1101, 0
    %1108 = vmatprep.subr.bf16.mxu0 0
    %1109 = vmatpush1.bf16.xpose.msra.mxu0 %v1106
    %1110 = vmatprep.subr.bf16.mxu0 0
    %1111 = vmatpush1.bf16.xpose.msra.mxu0 0
    %1112 = vmatprep.subr.bf16.mxu0 0
    %1113 = vmatpush1.bf16.xpose.msra.mxu0 0
    %1114 = vmatprep.subr.bf16.mxu0 0
    %1115 = vmatpush1.bf16.xpose.msra.mxu0 0
    %1116 = vmatprep.subr.bf16.mxu0 0
    %1117 = vmatpush1.bf16.xpose.msra.mxu0 0
    %1118 = vmatprep.subr.bf16.mxu0 0
    %1119 = vmatpush1.bf16.xpose.msra.mxu0 0
    %1120 = vmatprep.subr.bf16.mxu0 0
    %1121 = vmatpush1.bf16.xpose.msra.mxu0 0
    %1122 = vmatprep.subr.bf16.mxu0 0
    %1123 = vmatpush1.bf16.xpose.msra.mxu0 0
    %1124 = vmatprep.subr.bf16.mxu0 0
    %1125 = vmatpush1.bf16.xpose.msra.mxu0 0
    %1126 = vmatprep.subr.bf16.mxu0 0
    %1127 = vmatpush1.bf16.xpose.msra.mxu0 0
    %1128 = vmatprep.subr.bf16.mxu0 0
    %1129 = vmatpush1.bf16.xpose.msra.mxu0 0
    %1130 = vmatprep.subr.bf16.mxu0 0
    %1131 = vmatpush1.bf16.xpose.msra.mxu0 0
    %1132 = vmatprep.subr.bf16.mxu0 0
    %1133 = vmatpush1.bf16.xpose.msra.mxu0 0
    %1134 = vmatprep.subr.bf16.mxu0 0
    %1135 = vmatpush1.bf16.xpose.msra.mxu0 0
    %1136 = vmatprep.subr.bf16.mxu0 0
    %1137 = vmatpush1.bf16.xpose.msra.mxu0 0
    %1138 = vmatprep.subr.bf16.mxu0 0
    %1139 = vmatpush1.bf16.xpose.msra.mxu0 0
    %1140 = vmatprep.mubr.bf16.mxu0 0
    %1141 = vmatmul.mubr.bf16.gmra.mrb[0].mxu0 %v1103
    %v1142 = vpop.f32.mrb[0].mxu0
    %v1143 = vadd.f32 0.0, %v1142
    %v1144 = vpop.f32.mrb[0].mxu0
    %v1145 = vpop.f32.mrb[0].mxu0
    %v1146 = vpop.f32.mrb[0].mxu0
    %1147 = vdwg.mxu0
    %1148 = vrot.lane.b32.xlu0 %v1092, 96
    %v1149 = vpop.permute.xlu0 %1148
    %v1151 = vsel %vm176, %v1092, 0
    %v1154 = vsel %vm176, %v1149, 0
    %1156 = vmatprep.subr.bf16.mxu0 0
    %1157 = vmatpush1.bf16.xpose.msra.mxu0 %v1154
    %1158 = vmatprep.subr.bf16.mxu0 0
    %1159 = vmatpush1.bf16.xpose.msra.mxu0 0
    %1160 = vmatprep.subr.bf16.mxu0 0
    %1161 = vmatpush1.bf16.xpose.msra.mxu0 0
    %1162 = vmatprep.subr.bf16.mxu0 0
    %1163 = vmatpush1.bf16.xpose.msra.mxu0 0
    %1164 = vmatprep.subr.bf16.mxu0 0
    %1165 = vmatpush1.bf16.xpose.msra.mxu0 0
    %1166 = vmatprep.subr.bf16.mxu0 0
    %1167 = vmatpush1.bf16.xpose.msra.mxu0 0
    %1168 = vmatprep.subr.bf16.mxu0 0
    %1169 = vmatpush1.bf16.xpose.msra.mxu0 0
    %1170 = vmatprep.subr.bf16.mxu0 0
    %1171 = vmatpush1.bf16.xpose.msra.mxu0 0
    %1172 = vmatprep.subr.bf16.mxu0 0
    %1173 = vmatpush1.bf16.xpose.msra.mxu0 0
    %1174 = vmatprep.subr.bf16.mxu0 0
    %1175 = vmatpush1.bf16.xpose.msra.mxu0 0
    %1176 = vmatprep.subr.bf16.mxu0 0
    %1177 = vmatpush1.bf16.xpose.msra.mxu0 0
    %1178 = vmatprep.subr.bf16.mxu0 0
    %1179 = vmatpush1.bf16.xpose.msra.mxu0 0
    %1180 = vmatprep.subr.bf16.mxu0 0
    %1181 = vmatpush1.bf16.xpose.msra.mxu0 0
    %1182 = vmatprep.subr.bf16.mxu0 0
    %1183 = vmatpush1.bf16.xpose.msra.mxu0 0
    %1184 = vmatprep.subr.bf16.mxu0 0
    %1185 = vmatpush1.bf16.xpose.msra.mxu0 0
    %1186 = vmatprep.subr.bf16.mxu0 0
    %1187 = vmatpush1.bf16.xpose.msra.mxu0 0
    %1188 = vmatprep.mubr.bf16.mxu0 0
    %1189 = vmatmul.mubr.bf16.gmra.mrb[0].mxu0 %v1151
    %v1190 = vpop.f32.mrb[0].mxu0
    %v1191 = vadd.f32 0.0, %v1190
    %v1192 = vpop.f32.mrb[0].mxu0
    %v1193 = vpop.f32.mrb[0].mxu0
    %v1194 = vpop.f32.mrb[0].mxu0
    %1195 = vdwg.mxu0
    %v1196 = vmul.f32 %v1143, 0.25
    %v1197 = vmul.f32 %v1191, 0.25
    %v1198 = vadd.f32 %v1196, %v278
    %v1199 = vadd.f32 %v1197, %v282
    %v1200 = vsel %vm287, %v1198, -inf
    %1201 = vmax.xlane.f32.xlu0 %v1200
    %v1202 = vpop.xlane.xlu0 %1201
    %v1203 = vsel %vm287, %v1199, -inf
    %1204 = vmax.xlane.f32.xlu0 %v1203
    %v1205 = vpop.xlane.xlu0 %1204
    %v1206 = vsub.f32 %v1198, %v1202
    %v1207 = vsub.f32 %v1199, %v1205
    %v1208 = vmul.f32 %v1206, 1.442695
    %v1209 = vpow.pop %v1208
    %v1210 = vmul.f32 %v1207, 1.442695
    %v1211 = vpow.pop %v1210
    %v1212 = vsel %vm287, %v1209, 0.0
    %1213 = vadd.xlane.f32.xlu0 %v1212
    %v1214 = vpop.xlane.xlu0 %1213
    %v1215 = vsel %vm287, %v1211, 0.0
    %1216 = vadd.xlane.f32.xlu0 %v1215
    %v1217 = vpop.xlane.xlu0 %1216
    %v1218 = vrcp.pop %v1214
    %v1219 = vrcp.pop %v1217
    %v1220 = vmul.f32 %v1209, %v1218
    %v1221 = vmul.f32 %v1211, %v1219
    %v1222 = vpack.c.bf16 %v1220, %v1220
    %v1223 = vpack.c.bf16 %v1221, %v1221
    %1224 = vrot.lane.b32.xlu0 %v1091, 64
    %v1225 = vpop.permute.xlu0 %1224
    %v1227 = vsel %vm287, %v1222, 0
    %v1230 = vsel %vm317, %v1225, 0
    %1232 = vmatprep.subr.bf16.mxu0 0
    %1233 = vmatpush1.bf16.msra.mxu0 %v1230
    %1234 = vmatprep.subr.bf16.mxu0 0
    %1235 = vmatpush1.bf16.msra.mxu0 0
    %1236 = vmatprep.subr.bf16.mxu0 0
    %1237 = vmatpush1.bf16.msra.mxu0 0
    %1238 = vmatprep.subr.bf16.mxu0 0
    %1239 = vmatpush1.bf16.msra.mxu0 0
    %1240 = vmatprep.subr.bf16.mxu0 0
    %1241 = vmatpush1.bf16.msra.mxu0 0
    %1242 = vmatprep.subr.bf16.mxu0 0
    %1243 = vmatpush1.bf16.msra.mxu0 0
    %1244 = vmatprep.subr.bf16.mxu0 0
    %1245 = vmatpush1.bf16.msra.mxu0 0
    %1246 = vmatprep.subr.bf16.mxu0 0
    %1247 = vmatpush1.bf16.msra.mxu0 0
    %1248 = vmatprep.subr.bf16.mxu0 0
    %1249 = vmatpush1.bf16.msra.mxu0 0
    %1250 = vmatprep.subr.bf16.mxu0 0
    %1251 = vmatpush1.bf16.msra.mxu0 0
    %1252 = vmatprep.subr.bf16.mxu0 0
    %1253 = vmatpush1.bf16.msra.mxu0 0
    %1254 = vmatprep.subr.bf16.mxu0 0
    %1255 = vmatpush1.bf16.msra.mxu0 0
    %1256 = vmatprep.subr.bf16.mxu0 0
    %1257 = vmatpush1.bf16.msra.mxu0 0
    %1258 = vmatprep.subr.bf16.mxu0 0
    %1259 = vmatpush1.bf16.msra.mxu0 0
    %1260 = vmatprep.subr.bf16.mxu0 0
    %1261 = vmatpush1.bf16.msra.mxu0 0
    %1262 = vmatprep.subr.bf16.mxu0 0
    %1263 = vmatpush1.bf16.msra.mxu0 0
    %1264 = vmatprep.mubr.bf16.mxu0 0
    %1265 = vmatmul.mubr.bf16.gmra.mrb[0].mxu0 %v1227
    %v1266 = vpop.f32.mrb[0].mxu0
    %v1267 = vadd.f32 0.0, %v1266
    %v1268 = vpop.f32.mrb[0].mxu0
    %v1269 = vpop.f32.mrb[0].mxu0
    %v1270 = vpop.f32.mrb[0].mxu0
    %1271 = vdwg.mxu0
    %1272 = vrot.lane.b32.xlu0 %v1092, 64
    %v1273 = vpop.permute.xlu0 %1272
    %v1275 = vsel %vm287, %v1223, 0
    %v1278 = vsel %vm317, %v1273, 0
    %1280 = vmatprep.subr.bf16.mxu0 0
    %1281 = vmatpush1.bf16.msra.mxu0 %v1278
    %1282 = vmatprep.subr.bf16.mxu0 0
    %1283 = vmatpush1.bf16.msra.mxu0 0
    %1284 = vmatprep.subr.bf16.mxu0 0
    %1285 = vmatpush1.bf16.msra.mxu0 0
    %1286 = vmatprep.subr.bf16.mxu0 0
    %1287 = vmatpush1.bf16.msra.mxu0 0
    %1288 = vmatprep.subr.bf16.mxu0 0
    %1289 = vmatpush1.bf16.msra.mxu0 0
    %1290 = vmatprep.subr.bf16.mxu0 0
    %1291 = vmatpush1.bf16.msra.mxu0 0
    %1292 = vmatprep.subr.bf16.mxu0 0
    %1293 = vmatpush1.bf16.msra.mxu0 0
    %1294 = vmatprep.subr.bf16.mxu0 0
    %1295 = vmatpush1.bf16.msra.mxu0 0
    %1296 = vmatprep.subr.bf16.mxu0 0
    %1297 = vmatpush1.bf16.msra.mxu0 0
    %1298 = vmatprep.subr.bf16.mxu0 0
    %1299 = vmatpush1.bf16.msra.mxu0 0
    %1300 = vmatprep.subr.bf16.mxu0 0
    %1301 = vmatpush1.bf16.msra.mxu0 0
    %1302 = vmatprep.subr.bf16.mxu0 0
    %1303 = vmatpush1.bf16.msra.mxu0 0
    %1304 = vmatprep.subr.bf16.mxu0 0
    %1305 = vmatpush1.bf16.msra.mxu0 0
    %1306 = vmatprep.subr.bf16.mxu0 0
    %1307 = vmatpush1.bf16.msra.mxu0 0
    %1308 = vmatprep.subr.bf16.mxu0 0
    %1309 = vmatpush1.bf16.msra.mxu0 0
    %1310 = vmatprep.subr.bf16.mxu0 0
    %1311 = vmatpush1.bf16.msra.mxu0 0
    %1312 = vmatprep.mubr.bf16.mxu0 0
    %1313 = vmatmul.mubr.bf16.gmra.mrb[0].mxu0 %v1275
    %v1314 = vpop.f32.mrb[0].mxu0
    %v1315 = vadd.f32 0.0, %v1314
    %v1316 = vpop.f32.mrb[0].mxu0
    %v1317 = vpop.f32.mrb[0].mxu0
    %v1318 = vpop.f32.mrb[0].mxu0
    %1319 = vdwg.mxu0
    %v1320 = vpack.c.bf16 %v1315, %v1267
    %1321 = vrot.lane.b32.xlu0 %v1091, 112
    %v1322 = vpop.permute.xlu0 %1321
    %1323 = vrot.lane.b32.xlu0 %v1091, 80
    %v1324 = vpop.permute.xlu0 %1323
    %v1326 = vsel %vm176, %v1322, 0
    %v1329 = vsel %vm176, %v1324, 0
    %1331 = vmatprep.subr.bf16.mxu0 0
    %1332 = vmatpush1.bf16.xpose.msra.mxu0 %v1329
    %1333 = vmatprep.subr.bf16.mxu0 0
    %1334 = vmatpush1.bf16.xpose.msra.mxu0 0
    %1335 = vmatprep.subr.bf16.mxu0 0
    %1336 = vmatpush1.bf16.xpose.msra.mxu0 0
    %1337 = vmatprep.subr.bf16.mxu0 0
    %1338 = vmatpush1.bf16.xpose.msra.mxu0 0
    %1339 = vmatprep.subr.bf16.mxu0 0
    %1340 = vmatpush1.bf16.xpose.msra.mxu0 0
    %1341 = vmatprep.subr.bf16.mxu0 0
    %1342 = vmatpush1.bf16.xpose.msra.mxu0 0
    %1343 = vmatprep.subr.bf16.mxu0 0
    %1344 = vmatpush1.bf16.xpose.msra.mxu0 0
    %1345 = vmatprep.subr.bf16.mxu0 0
    %1346 = vmatpush1.bf16.xpose.msra.mxu0 0
    %1347 = vmatprep.subr.bf16.mxu0 0
    %1348 = vmatpush1.bf16.xpose.msra.mxu0 0
    %1349 = vmatprep.subr.bf16.mxu0 0
    %1350 = vmatpush1.bf16.xpose.msra.mxu0 0
    %1351 = vmatprep.subr.bf16.mxu0 0
    %1352 = vmatpush1.bf16.xpose.msra.mxu0 0
    %1353 = vmatprep.subr.bf16.mxu0 0
    %1354 = vmatpush1.bf16.xpose.msra.mxu0 0
    %1355 = vmatprep.subr.bf16.mxu0 0
    %1356 = vmatpush1.bf16.xpose.msra.mxu0 0
    %1357 = vmatprep.subr.bf16.mxu0 0
    %1358 = vmatpush1.bf16.xpose.msra.mxu0 0
    %1359 = vmatprep.subr.bf16.mxu0 0
    %1360 = vmatpush1.bf16.xpose.msra.mxu0 0
    %1361 = vmatprep.subr.bf16.mxu0 0
    %1362 = vmatpush1.bf16.xpose.msra.mxu0 0
    %1363 = vmatprep.mubr.bf16.mxu0 0
    %1364 = vmatmul.mubr.bf16.gmra.mrb[0].mxu0 %v1326
    %v1365 = vpop.f32.mrb[0].mxu0
    %v1366 = vadd.f32 0.0, %v1365
    %v1367 = vpop.f32.mrb[0].mxu0
    %v1368 = vpop.f32.mrb[0].mxu0
    %v1369 = vpop.f32.mrb[0].mxu0
    %1370 = vdwg.mxu0
    %1371 = vrot.lane.b32.xlu0 %v1092, 112
    %v1372 = vpop.permute.xlu0 %1371
    %1373 = vrot.lane.b32.xlu0 %v1092, 80
    %v1374 = vpop.permute.xlu0 %1373
    %v1376 = vsel %vm176, %v1372, 0
    %v1379 = vsel %vm176, %v1374, 0
    %1381 = vmatprep.subr.bf16.mxu0 0
    %1382 = vmatpush1.bf16.xpose.msra.mxu0 %v1379
    %1383 = vmatprep.subr.bf16.mxu0 0
    %1384 = vmatpush1.bf16.xpose.msra.mxu0 0
    %1385 = vmatprep.subr.bf16.mxu0 0
    %1386 = vmatpush1.bf16.xpose.msra.mxu0 0
    %1387 = vmatprep.subr.bf16.mxu0 0
    %1388 = vmatpush1.bf16.xpose.msra.mxu0 0
    %1389 = vmatprep.subr.bf16.mxu0 0
    %1390 = vmatpush1.bf16.xpose.msra.mxu0 0
    %1391 = vmatprep.subr.bf16.mxu0 0
    %1392 = vmatpush1.bf16.xpose.msra.mxu0 0
    %1393 = vmatprep.subr.bf16.mxu0 0
    %1394 = vmatpush1.bf16.xpose.msra.mxu0 0
    %1395 = vmatprep.subr.bf16.mxu0 0
    %1396 = vmatpush1.bf16.xpose.msra.mxu0 0
    %1397 = vmatprep.subr.bf16.mxu0 0
    %1398 = vmatpush1.bf16.xpose.msra.mxu0 0
    %1399 = vmatprep.subr.bf16.mxu0 0
    %1400 = vmatpush1.bf16.xpose.msra.mxu0 0
    %1401 = vmatprep.subr.bf16.mxu0 0
    %1402 = vmatpush1.bf16.xpose.msra.mxu0 0
    %1403 = vmatprep.subr.bf16.mxu0 0
    %1404 = vmatpush1.bf16.xpose.msra.mxu0 0
    %1405 = vmatprep.subr.bf16.mxu0 0
    %1406 = vmatpush1.bf16.xpose.msra.mxu0 0
    %1407 = vmatprep.subr.bf16.mxu0 0
    %1408 = vmatpush1.bf16.xpose.msra.mxu0 0
    %1409 = vmatprep.subr.bf16.mxu0 0
    %1410 = vmatpush1.bf16.xpose.msra.mxu0 0
    %1411 = vmatprep.subr.bf16.mxu0 0
    %1412 = vmatpush1.bf16.xpose.msra.mxu0 0
    %1413 = vmatprep.mubr.bf16.mxu0 0
    %1414 = vmatmul.mubr.bf16.gmra.mrb[0].mxu0 %v1376
    %v1415 = vpop.f32.mrb[0].mxu0
    %v1416 = vadd.f32 0.0, %v1415
    %v1417 = vpop.f32.mrb[0].mxu0
    %v1418 = vpop.f32.mrb[0].mxu0
    %v1419 = vpop.f32.mrb[0].mxu0
    %1420 = vdwg.mxu0
    %v1421 = vmul.f32 %v1366, 0.25
    %v1422 = vmul.f32 %v1416, 0.25
    %v1423 = vadd.f32 %v1421, %v278
    %v1424 = vadd.f32 %v1422, %v282
    %v1425 = vsel %vm287, %v1423, -inf
    %1426 = vmax.xlane.f32.xlu0 %v1425
    %v1427 = vpop.xlane.xlu0 %1426
    %v1428 = vsel %vm287, %v1424, -inf
    %1429 = vmax.xlane.f32.xlu0 %v1428
    %v1430 = vpop.xlane.xlu0 %1429
    %v1431 = vsub.f32 %v1423, %v1427
    %v1432 = vsub.f32 %v1424, %v1430
    %v1433 = vmul.f32 %v1431, 1.442695
    %v1434 = vpow.pop %v1433
    %v1435 = vmul.f32 %v1432, 1.442695
    %v1436 = vpow.pop %v1435
    %v1437 = vsel %vm287, %v1434, 0.0
    %1438 = vadd.xlane.f32.xlu0 %v1437
    %v1439 = vpop.xlane.xlu0 %1438
    %v1440 = vsel %vm287, %v1436, 0.0
    %1441 = vadd.xlane.f32.xlu0 %v1440
    %v1442 = vpop.xlane.xlu0 %1441
    %v1443 = vrcp.pop %v1439
    %v1444 = vrcp.pop %v1442
    %v1445 = vmul.f32 %v1434, %v1443
    %v1446 = vmul.f32 %v1436, %v1444
    %v1447 = vpack.c.bf16 %v1445, %v1445
    %v1448 = vpack.c.bf16 %v1446, %v1446
    %1449 = vrot.lane.b32.xlu0 %v1091, 48
    %v1450 = vpop.permute.xlu0 %1449
    %v1452 = vsel %vm287, %v1447, 0
    %v1455 = vsel %vm317, %v1450, 0
    %1457 = vmatprep.subr.bf16.mxu0 0
    %1458 = vmatpush1.bf16.msra.mxu0 %v1455
    %1459 = vmatprep.subr.bf16.mxu0 0
    %1460 = vmatpush1.bf16.msra.mxu0 0
    %1461 = vmatprep.subr.bf16.mxu0 0
    %1462 = vmatpush1.bf16.msra.mxu0 0
    %1463 = vmatprep.subr.bf16.mxu0 0
    %1464 = vmatpush1.bf16.msra.mxu0 0
    %1465 = vmatprep.subr.bf16.mxu0 0
    %1466 = vmatpush1.bf16.msra.mxu0 0
    %1467 = vmatprep.subr.bf16.mxu0 0
    %1468 = vmatpush1.bf16.msra.mxu0 0
    %1469 = vmatprep.subr.bf16.mxu0 0
    %1470 = vmatpush1.bf16.msra.mxu0 0
    %1471 = vmatprep.subr.bf16.mxu0 0
    %1472 = vmatpush1.bf16.msra.mxu0 0
    %1473 = vmatprep.subr.bf16.mxu0 0
    %1474 = vmatpush1.bf16.msra.mxu0 0
    %1475 = vmatprep.subr.bf16.mxu0 0
    %1476 = vmatpush1.bf16.msra.mxu0 0
    %1477 = vmatprep.subr.bf16.mxu0 0
    %1478 = vmatpush1.bf16.msra.mxu0 0
    %1479 = vmatprep.subr.bf16.mxu0 0
    %1480 = vmatpush1.bf16.msra.mxu0 0
    %1481 = vmatprep.subr.bf16.mxu0 0
    %1482 = vmatpush1.bf16.msra.mxu0 0
    %1483 = vmatprep.subr.bf16.mxu0 0
    %1484 = vmatpush1.bf16.msra.mxu0 0
    %1485 = vmatprep.subr.bf16.mxu0 0
    %1486 = vmatpush1.bf16.msra.mxu0 0
    %1487 = vmatprep.subr.bf16.mxu0 0
    %1488 = vmatpush1.bf16.msra.mxu0 0
    %1489 = vmatprep.mubr.bf16.mxu0 0
    %1490 = vmatmul.mubr.bf16.gmra.mrb[0].mxu0 %v1452
    %v1491 = vpop.f32.mrb[0].mxu0
    %v1492 = vadd.f32 0.0, %v1491
    %v1493 = vpop.f32.mrb[0].mxu0
    %v1494 = vpop.f32.mrb[0].mxu0
    %v1495 = vpop.f32.mrb[0].mxu0
    %1496 = vdwg.mxu0
    %1497 = vrot.lane.b32.xlu0 %v1092, 48
    %v1498 = vpop.permute.xlu0 %1497
    %v1500 = vsel %vm287, %v1448, 0
    %v1503 = vsel %vm317, %v1498, 0
    %1505 = vmatprep.subr.bf16.mxu0 0
    %1506 = vmatpush1.bf16.msra.mxu0 %v1503
    %1507 = vmatprep.subr.bf16.mxu0 0
    %1508 = vmatpush1.bf16.msra.mxu0 0
    %1509 = vmatprep.subr.bf16.mxu0 0
    %1510 = vmatpush1.bf16.msra.mxu0 0
    %1511 = vmatprep.subr.bf16.mxu0 0
    %1512 = vmatpush1.bf16.msra.mxu0 0
    %1513 = vmatprep.subr.bf16.mxu0 0
    %1514 = vmatpush1.bf16.msra.mxu0 0
    %1515 = vmatprep.subr.bf16.mxu0 0
    %1516 = vmatpush1.bf16.msra.mxu0 0
    %1517 = vmatprep.subr.bf16.mxu0 0
    %1518 = vmatpush1.bf16.msra.mxu0 0
    %1519 = vmatprep.subr.bf16.mxu0 0
    %1520 = vmatpush1.bf16.msra.mxu0 0
    %1521 = vmatprep.subr.bf16.mxu0 0
    %1522 = vmatpush1.bf16.msra.mxu0 0
    %1523 = vmatprep.subr.bf16.mxu0 0
    %1524 = vmatpush1.bf16.msra.mxu0 0
    %1525 = vmatprep.subr.bf16.mxu0 0
    %1526 = vmatpush1.bf16.msra.mxu0 0
    %1527 = vmatprep.subr.bf16.mxu0 0
    %1528 = vmatpush1.bf16.msra.mxu0 0
    %1529 = vmatprep.subr.bf16.mxu0 0
    %1530 = vmatpush1.bf16.msra.mxu0 0
    %1531 = vmatprep.subr.bf16.mxu0 0
    %1532 = vmatpush1.bf16.msra.mxu0 0
    %1533 = vmatprep.subr.bf16.mxu0 0
    %1534 = vmatpush1.bf16.msra.mxu0 0
    %1535 = vmatprep.subr.bf16.mxu0 0
    %1536 = vmatpush1.bf16.msra.mxu0 0
    %1537 = vmatprep.mubr.bf16.mxu0 0
    %1538 = vmatmul.mubr.bf16.gmra.mrb[0].mxu0 %v1500
    %v1539 = vpop.f32.mrb[0].mxu0
    %v1540 = vadd.f32 0.0, %v1539
    %v1541 = vpop.f32.mrb[0].mxu0
    %v1542 = vpop.f32.mrb[0].mxu0
    %v1543 = vpop.f32.mrb[0].mxu0
    %1544 = vdwg.mxu0
    %v1545 = vpack.c.bf16 %v1540, %v1492
    %v1548 = vunpack.c.l.b16 %v1098
    %v1549 = vunpack.c.l.b16 %v1099
    %v1550 = vpack.c.b16 %v1549, %v1548
    %v1553 = vsel %vm176, %v1545, 0
    %1555 = vmatprep.subr.bf16.mxu0 0
    %1556 = vmatpush1.bf16.msra.mxu0 %v1550
    %1557 = vmatprep.subr.bf16.mxu0 0
    %1558 = vmatpush1.bf16.msra.mxu0 0
    %1559 = vmatprep.subr.bf16.mxu0 0
    %1560 = vmatpush1.bf16.msra.mxu0 0
    %1561 = vmatprep.subr.bf16.mxu0 0
    %1562 = vmatpush1.bf16.msra.mxu0 0
    %1563 = vmatprep.subr.bf16.mxu0 0
    %1564 = vmatpush1.bf16.msra.mxu0 0
    %1565 = vmatprep.subr.bf16.mxu0 0
    %1566 = vmatpush1.bf16.msra.mxu0 0
    %1567 = vmatprep.subr.bf16.mxu0 0
    %1568 = vmatpush1.bf16.msra.mxu0 0
    %1569 = vmatprep.subr.bf16.mxu0 0
    %1570 = vmatpush1.bf16.msra.mxu0 0
    %1571 = vmatprep.subr.bf16.mxu0 0
    %1572 = vmatpush1.bf16.msra.mxu0 0
    %1573 = vmatprep.subr.bf16.mxu0 0
    %1574 = vmatpush1.bf16.msra.mxu0 0
    %1575 = vmatprep.subr.bf16.mxu0 0
    %1576 = vmatpush1.bf16.msra.mxu0 0
    %1577 = vmatprep.subr.bf16.mxu0 0
    %1578 = vmatpush1.bf16.msra.mxu0 0
    %1579 = vmatprep.subr.bf16.mxu0 0
    %1580 = vmatpush1.bf16.msra.mxu0 0
    %1581 = vmatprep.subr.bf16.mxu0 0
    %1582 = vmatpush1.bf16.msra.mxu0 0
    %1583 = vmatprep.subr.bf16.mxu0 0
    %1584 = vmatpush1.bf16.msra.mxu0 0
    %1585 = vmatprep.subr.bf16.mxu0 0
    %1586 = vmatpush1.bf16.msra.mxu0 0
    %1587 = vmatprep.mubr.bf16.mxu0 0
    %1588 = vmatmul.mubr.bf16.gmra.mrb[0].mxu0 %v1553
    %v1589 = vpop.f32.mrb[0].mxu0
    %v1590 = vadd.f32 0.0, %v1589
    %v1591 = vpop.f32.mrb[0].mxu0
    %v1592 = vpop.f32.mrb[0].mxu0
    %v1593 = vadd.f32 0.0, %v1592
    %v1594 = vpop.f32.mrb[0].mxu0
    %1595 = vdwg.mxu0
    %v1598 = vunpack.c.l.b16 %v1096
    %v1599 = vunpack.c.l.b16 %v1097
    %v1600 = vpack.c.b16 %v1599, %v1598
    %v1603 = vsel %vm176, %v1320, 0
    %1605 = vmatprep.subr.bf16.mxu0 0
    %1606 = vmatpush1.bf16.msra.mxu0 %v1600
    %1607 = vmatprep.subr.bf16.mxu0 0
    %1608 = vmatpush1.bf16.msra.mxu0 0
    %1609 = vmatprep.subr.bf16.mxu0 0
    %1610 = vmatpush1.bf16.msra.mxu0 0
    %1611 = vmatprep.subr.bf16.mxu0 0
    %1612 = vmatpush1.bf16.msra.mxu0 0
    %1613 = vmatprep.subr.bf16.mxu0 0
    %1614 = vmatpush1.bf16.msra.mxu0 0
    %1615 = vmatprep.subr.bf16.mxu0 0
    %1616 = vmatpush1.bf16.msra.mxu0 0
    %1617 = vmatprep.subr.bf16.mxu0 0
    %1618 = vmatpush1.bf16.msra.mxu0 0
    %1619 = vmatprep.subr.bf16.mxu0 0
    %1620 = vmatpush1.bf16.msra.mxu0 0
    %1621 = vmatprep.subr.bf16.mxu0 0
    %1622 = vmatpush1.bf16.msra.mxu0 0
    %1623 = vmatprep.subr.bf16.mxu0 0
    %1624 = vmatpush1.bf16.msra.mxu0 0
    %1625 = vmatprep.subr.bf16.mxu0 0
    %1626 = vmatpush1.bf16.msra.mxu0 0
    %1627 = vmatprep.subr.bf16.mxu0 0
    %1628 = vmatpush1.bf16.msra.mxu0 0
    %1629 = vmatprep.subr.bf16.mxu0 0
    %1630 = vmatpush1.bf16.msra.mxu0 0
    %1631 = vmatprep.subr.bf16.mxu0 0
    %1632 = vmatpush1.bf16.msra.mxu0 0
    %1633 = vmatprep.subr.bf16.mxu0 0
    %1634 = vmatpush1.bf16.msra.mxu0 0
    %1635 = vmatprep.subr.bf16.mxu0 0
    %1636 = vmatpush1.bf16.msra.mxu0 0
    %1637 = vmatprep.mubr.bf16.mxu0 0
    %1638 = vmatmul.mubr.bf16.gmra.mrb[0].mxu0 %v1603
    %v1639 = vpop.f32.mrb[0].mxu0
    %v1640 = vadd.f32 %v1590, %v1639
    %v1641 = vpop.f32.mrb[0].mxu0
    %v1642 = vpop.f32.mrb[0].mxu0
    %v1643 = vadd.f32 %v1593, %v1642
    %v1644 = vpop.f32.mrb[0].mxu0
    %1645 = vdwg.mxu0
    %v1646 = vadd.f32 %v1015, %v1640
    %v1647 = vadd.f32 %v1016, %v1643
    %v1648 = vlaneseq
    %v1649 = vshrl.u32 %v1648, 7
    %v1650 = vsub.s32 0, %v1649
    %v1651 = vrot.slane %v1094, %v1650
    %v1652 = vadd.f32 %v1646, %v1651
    %v1653 = vadd.f32 %v1647, %v1651
    %v1654 = vsel %vm53, %v1652, 0.0
    %1655 = vadd.xlane.f32.xlu0 %v1654
    %v1656 = vpop.xlane.xlu0 %1655
    %v1657 = vsel %vm53, %v1653, 0.0
    %1658 = vadd.xlane.f32.xlu0 %v1657
    %v1659 = vpop.xlane.xlu0 %1658
    %v1660 = vmul.f32 %v1656, %v60
    %v1661 = vmul.f32 %v1659, %v60
    %v1662 = vsub.f32 %v1652, %v1660
    %v1663 = vsub.f32 %v1653, %v1661
    %v1664 = vmul.f32 %v1662, %v1662
    %v1665 = vmul.f32 %v1663, %v1663
    %v1666 = vsel %vm53, %v1664, 0.0
    %1667 = vadd.xlane.f32.xlu0 %v1666
    %v1668 = vpop.xlane.xlu0 %1667
    %v1669 = vsel %vm53, %v1665, 0.0
    %1670 = vadd.xlane.f32.xlu0 %v1669
    %v1671 = vpop.xlane.xlu0 %1670
    %v1672 = vmul.f32 %v1668, %v60
    %v1673 = vmul.f32 %v1671, %v60
    %v1674 = vadd.f32 %v1672, 1e-12
    %v1675 = vadd.f32 %v1673, 1e-12
    %v1676 = vrsqrt.pop %v1674
    %v1677 = vrsqrt.pop %v1675
    %v1678 = vmul.f32 %v1662, %v1676
    %v1679 = vmul.f32 %v1663, %v1677
    %v1680 = vlaneseq
    %v1681 = vshrl.u32 %v1680, 7
    %v1682 = vsub.s32 1, %v1681
    %v1683 = vrot.slane %v1094, %v1682
    %v1684 = vmul.f32 %v1678, %v1683
    %v1685 = vmul.f32 %v1679, %v1683
    %v1686 = vlaneseq
    %v1687 = vshrl.u32 %v1686, 7
    %v1688 = vsub.s32 2, %v1687
    %v1689 = vrot.slane %v1094, %v1688
    %v1690 = vadd.f32 %v1684, %v1689
    %v1691 = vadd.f32 %v1685, %v1689
    %v1692 = vpack.c.bf16 %v1691, %v1690
    %s1693 = scalar_lea.vmem %s7, 16
    %v1694 = vld [vmem:[%s1693] sm:$0xf]
    %v1695 = vld [vmem:[%s1693 + $0x4] sm:$0xf]
    %v1696 = vld [vmem:[%s1693 + $0x8] sm:$0xf]
    %v1697 = vld [vmem:[%s1693 + $0xc] sm:$0xf]
    %s1698 = scalar_lea.vmem %s8, 1
    %v1699 = vld [vmem:[%s1698] sm:$0x1]
    %v1701 = vlaneseq
    %v1702 = vshrl.u32 %v1701, 7
    %v1703 = vsub.s32 0, %v1702
    %v1704 = vrot.slane %v1699, %v1703
    %v1710 = vunpack.c.l.b16 %v1694
    %v1711 = vunpack.c.l.b16 %v1695
    %v1712 = vunpack.c.l.b16 %v1696
    %v1713 = vunpack.c.l.b16 %v1697
    %v1714 = vpack.c.b16 %v1711, %v1710
    %v1715 = vpack.c.b16 %v1713, %v1712
    %v1719 = vsel %vm53, %v1692, 0
    %1721 = vmatprep.subr.bf16.mxu0 0
    %1722 = vmatpush1.bf16.msra.mxu0 %v1714
    %1723 = vmatprep.subr.bf16.mxu0 0
    %1724 = vmatpush1.bf16.msra.mxu0 %v1715
    %1725 = vmatprep.subr.bf16.mxu0 0
    %1726 = vmatpush1.bf16.msra.mxu0 0
    %1727 = vmatprep.subr.bf16.mxu0 0
    %1728 = vmatpush1.bf16.msra.mxu0 0
    %1729 = vmatprep.subr.bf16.mxu0 0
    %1730 = vmatpush1.bf16.msra.mxu0 0
    %1731 = vmatprep.subr.bf16.mxu0 0
    %1732 = vmatpush1.bf16.msra.mxu0 0
    %1733 = vmatprep.subr.bf16.mxu0 0
    %1734 = vmatpush1.bf16.msra.mxu0 0
    %1735 = vmatprep.subr.bf16.mxu0 0
    %1736 = vmatpush1.bf16.msra.mxu0 0
    %1737 = vmatprep.subr.bf16.mxu0 0
    %1738 = vmatpush1.bf16.msra.mxu0 0
    %1739 = vmatprep.subr.bf16.mxu0 0
    %1740 = vmatpush1.bf16.msra.mxu0 0
    %1741 = vmatprep.subr.bf16.mxu0 0
    %1742 = vmatpush1.bf16.msra.mxu0 0
    %1743 = vmatprep.subr.bf16.mxu0 0
    %1744 = vmatpush1.bf16.msra.mxu0 0
    %1745 = vmatprep.subr.bf16.mxu0 0
    %1746 = vmatpush1.bf16.msra.mxu0 0
    %1747 = vmatprep.subr.bf16.mxu0 0
    %1748 = vmatpush1.bf16.msra.mxu0 0
    %1749 = vmatprep.subr.bf16.mxu0 0
    %1750 = vmatpush1.bf16.msra.mxu0 0
    %1751 = vmatprep.subr.bf16.mxu0 0
    %1752 = vmatpush1.bf16.msra.mxu0 0
    %1753 = vmatprep.mubr.bf16.mxu0 0
    %1754 = vmatmul.mubr.bf16.gmra.mrb[0].mxu0 %v1719
    %v1755 = vpop.f32.mrb[0].mxu0
    %v1756 = vadd.f32 %v1704, %v1755
    %v1757 = vpop.f32.mrb[0].mxu0
    %v1758 = vpop.f32.mrb[0].mxu0
    %v1759 = vadd.f32 %v1704, %v1758
    %v1760 = vpop.f32.mrb[0].mxu0
    %1761 = vdwg.mxu0
    %v1762 = vmul.f32 %v1756, %v1756
    %v1763 = vmul.f32 %v1759, %v1759
    %v1764 = vmul.f32 %v1756, %v1762
    %v1765 = vmul.f32 %v1759, %v1763
    %v1766 = vmul.f32 %v1764, 0.044715
    %v1767 = vmul.f32 %v1765, 0.044715
    %v1768 = vadd.f32 %v1756, %v1766
    %v1769 = vadd.f32 %v1759, %v1767
    %v1770 = vmul.f32 %v1768, 0.7978846
    %v1771 = vmul.f32 %v1769, 0.7978846
    %v1772 = vtanh.pop %v1770
    %v1773 = vtanh.pop %v1771
    %v1774 = vadd.f32 %v1772, 1.0
    %v1775 = vadd.f32 %v1773, 1.0
    %v1776 = vmul.f32 %v1774, 0.5
    %v1777 = vmul.f32 %v1775, 0.5
    %v1778 = vmul.f32 %v1756, %v1776
    %v1779 = vmul.f32 %v1759, %v1777
    %v1780 = vpack.c.bf16 %v1779, %v1778
    %s1781 = scalar_lea.vmem %s9, 64
    %v1782 = vld [vmem:[%s1781] sm:$0xf]
    %v1783 = vld [vmem:[%s1781 + $0x4] sm:$0xf]
    %v1784 = vld [vmem:[%s1781 + $0x8] sm:$0xf]
    %v1785 = vld [vmem:[%s1781 + $0xc] sm:$0xf]
    %v1786 = vld [vmem:[%s1781 + $0x10] sm:$0xf]
    %v1787 = vld [vmem:[%s1781 + $0x14] sm:$0xf]
    %v1788 = vld [vmem:[%s1781 + $0x18] sm:$0xf]
    %v1789 = vld [vmem:[%s1781 + $0x1c] sm:$0xf]
    %v1790 = vld [vmem:[%s1781 + $0x20] sm:$0xf]
    %v1791 = vld [vmem:[%s1781 + $0x24] sm:$0xf]
    %v1792 = vld [vmem:[%s1781 + $0x28] sm:$0xf]
    %v1793 = vld [vmem:[%s1781 + $0x2c] sm:$0xf]
    %v1794 = vld [vmem:[%s1781 + $0x30] sm:$0xf]
    %v1795 = vld [vmem:[%s1781 + $0x34] sm:$0xf]
    %v1796 = vld [vmem:[%s1781 + $0x38] sm:$0xf]
    %v1797 = vld [vmem:[%s1781 + $0x3c] sm:$0xf]
    %v1798 = vlaneseq
    %v1799 = vshrl.u32 %v1798, 7
    %v1800 = vsub.s32 5, %v1799
    %v1801 = vrot.slane %v1094, %v1800
    %v1818 = vunpack.c.l.b16 %v1782
    %v1819 = vunpack.c.l.b16 %v1783
    %v1820 = vunpack.c.l.b16 %v1784
    %v1821 = vunpack.c.l.b16 %v1785
    %v1822 = vunpack.c.l.b16 %v1786
    %v1823 = vunpack.c.l.b16 %v1787
    %v1824 = vunpack.c.l.b16 %v1788
    %v1825 = vunpack.c.l.b16 %v1789
    %v1826 = vunpack.c.l.b16 %v1790
    %v1827 = vunpack.c.l.b16 %v1791
    %v1828 = vunpack.c.l.b16 %v1792
    %v1829 = vunpack.c.l.b16 %v1793
    %v1830 = vunpack.c.l.b16 %v1794
    %v1831 = vunpack.c.l.b16 %v1795
    %v1832 = vunpack.c.l.b16 %v1796
    %v1833 = vunpack.c.l.b16 %v1797
    %v1834 = vpack.c.b16 %v1819, %v1818
    %v1835 = vpack.c.b16 %v1821, %v1820
    %v1836 = vpack.c.b16 %v1823, %v1822
    %v1837 = vpack.c.b16 %v1825, %v1824
    %v1838 = vpack.c.b16 %v1827, %v1826
    %v1839 = vpack.c.b16 %v1829, %v1828
    %v1840 = vpack.c.b16 %v1831, %v1830
    %v1841 = vpack.c.b16 %v1833, %v1832
    %1850 = vmatprep.subr.bf16.mxu0 0
    %1851 = vmatpush1.bf16.msra.mxu0 %v1834
    %1852 = vmatprep.subr.bf16.mxu0 0
    %1853 = vmatpush1.bf16.msra.mxu0 %v1835
    %1854 = vmatprep.subr.bf16.mxu0 0
    %1855 = vmatpush1.bf16.msra.mxu0 %v1836
    %1856 = vmatprep.subr.bf16.mxu0 0
    %1857 = vmatpush1.bf16.msra.mxu0 %v1837
    %1858 = vmatprep.subr.bf16.mxu0 0
    %1859 = vmatpush1.bf16.msra.mxu0 %v1838
    %1860 = vmatprep.subr.bf16.mxu0 0
    %1861 = vmatpush1.bf16.msra.mxu0 %v1839
    %1862 = vmatprep.subr.bf16.mxu0 0
    %1863 = vmatpush1.bf16.msra.mxu0 %v1840
    %1864 = vmatprep.subr.bf16.mxu0 0
    %1865 = vmatpush1.bf16.msra.mxu0 %v1841
    %1866 = vmatprep.subr.bf16.mxu0 0
    %1867 = vmatpush1.bf16.msra.mxu0 0
    %1868 = vmatprep.subr.bf16.mxu0 0
    %1869 = vmatpush1.bf16.msra.mxu0 0
    %1870 = vmatprep.subr.bf16.mxu0 0
    %1871 = vmatpush1.bf16.msra.mxu0 0
    %1872 = vmatprep.subr.bf16.mxu0 0
    %1873 = vmatpush1.bf16.msra.mxu0 0
    %1874 = vmatprep.subr.bf16.mxu0 0
    %1875 = vmatpush1.bf16.msra.mxu0 0
    %1876 = vmatprep.subr.bf16.mxu0 0
    %1877 = vmatpush1.bf16.msra.mxu0 0
    %1878 = vmatprep.subr.bf16.mxu0 0
    %1879 = vmatpush1.bf16.msra.mxu0 0
    %1880 = vmatprep.subr.bf16.mxu0 0
    %1881 = vmatpush1.bf16.msra.mxu0 0
    %1882 = vmatprep.mubr.bf16.mxu0 0
    %1883 = vmatmul.mubr.bf16.gmra.mrb[0].mxu0 %v1780
    %v1884 = vpop.f32.mrb[0].mxu0
    %v1885 = vadd.f32 %v1801, %v1884
    %v1886 = vpop.f32.mrb[0].mxu0
    %v1887 = vpop.f32.mrb[0].mxu0
    %v1888 = vadd.f32 %v1801, %v1887
    %v1889 = vpop.f32.mrb[0].mxu0
    %1890 = vdwg.mxu0
    %v1891 = vadd.f32 %v1690, %v1885
    %v1892 = vadd.f32 %v1691, %v1888
    %v1893 = vsel %vm53, %v1891, 0.0
    %1894 = vadd.xlane.f32.xlu0 %v1893
    %v1895 = vpop.xlane.xlu0 %1894
    %v1896 = vsel %vm53, %v1892, 0.0
    %1897 = vadd.xlane.f32.xlu0 %v1896
    %v1898 = vpop.xlane.xlu0 %1897
    %v1899 = vmul.f32 %v1895, %v60
    %v1900 = vmul.f32 %v1898, %v60
    %v1901 = vsub.f32 %v1891, %v1899
    %v1902 = vsub.f32 %v1892, %v1900
    %v1903 = vmul.f32 %v1901, %v1901
    %v1904 = vmul.f32 %v1902, %v1902
    %v1905 = vsel %vm53, %v1903, 0.0
    %1906 = vadd.xlane.f32.xlu0 %v1905
    %v1907 = vpop.xlane.xlu0 %1906
    %v1908 = vsel %vm53, %v1904, 0.0
    %1909 = vadd.xlane.f32.xlu0 %v1908
    %v1910 = vpop.xlane.xlu0 %1909
    %v1911 = vmul.f32 %v1907, %v60
    %v1912 = vmul.f32 %v1910, %v60
    %v1913 = vadd.f32 %v1911, 1e-12
    %v1914 = vadd.f32 %v1912, 1e-12
    %v1915 = vrsqrt.pop %v1913
    %v1916 = vrsqrt.pop %v1914
    %v1917 = vmul.f32 %v1901, %v1915
    %v1918 = vmul.f32 %v1902, %v1916
    %v1919 = vlaneseq
    %v1920 = vshrl.u32 %v1919, 7
    %v1921 = vsub.s32 3, %v1920
    %v1922 = vrot.slane %v1094, %v1921
    %v1923 = vmul.f32 %v1917, %v1922
    %v1924 = vmul.f32 %v1918, %v1922
    %v1925 = vlaneseq
    %v1926 = vshrl.u32 %v1925, 7
    %v1927 = vsub.s32 4, %v1926
    %v1928 = vrot.slane %v1094, %v1927
    %v1929 = vadd.f32 %v1923, %v1928
    %v1930 = vadd.f32 %v1924, %v1928
    %v1931 = vpack.c.bf16 %v1929, %v1929
    %v1932 = vpack.c.bf16 %v1930, %v1930
    %v1933 = vld [vmem:[%s10] sm:$0xf]
    %v1934 = vld [vmem:[%s10 + $0x4] sm:$0xf]
    %v1935 = vld [vmem:[%s10 + $0x8] sm:$0xf]
    %v1936 = vld [vmem:[%s10 + $0xc] sm:$0xf]
    %v1937 = vld [vmem:[%s11] sm:$0x1]
    %v1939 = vlaneseq
    %v1940 = vshrl.u32 %v1939, 7
    %v1941 = vsub.s32 0, %v1940
    %v1942 = vrot.slane %v1937, %v1941
    %v1946 = vunpack.c.l.b16 %v1931
    %v1947 = vunpack.c.l.b16 %v1932
    %v1948 = vrot.slane %v1947, 7
    %vm1949 = vcmask 1041409
    %v1950 = vsel %vm1949, %v1948, %v1946
    %v1951 = vpack.c.b16 %v1950, %v1950
    %v1956 = vunpack.c.l.b16 %v1933
    %v1957 = vunpack.c.l.b16 %v1934
    %v1958 = vunpack.c.l.b16 %v1935
    %v1959 = vunpack.c.l.b16 %v1936
    %v1960 = vpack.c.b16 %v1957, %v1956
    %v1961 = vpack.c.b16 %v1959, %v1958
    %v1965 = vsel %vm53, %v1951, 0
    %1967 = vmatprep.subr.bf16.mxu0 0
    %1968 = vmatpush1.bf16.msra.mxu0 %v1960
    %1969 = vmatprep.subr.bf16.mxu0 0
    %1970 = vmatpush1.bf16.msra.mxu0 %v1961
    %1971 = vmatprep.subr.bf16.mxu0 0
    %1972 = vmatpush1.bf16.msra.mxu0 0
    %1973 = vmatprep.subr.bf16.mxu0 0
    %1974 = vmatpush1.bf16.msra.mxu0 0
    %1975 = vmatprep.subr.bf16.mxu0 0
    %1976 = vmatpush1.bf16.msra.mxu0 0
    %1977 = vmatprep.subr.bf16.mxu0 0
    %1978 = vmatpush1.bf16.msra.mxu0 0
    %1979 = vmatprep.subr.bf16.mxu0 0
    %1980 = vmatpush1.bf16.msra.mxu0 0
    %1981 = vmatprep.subr.bf16.mxu0 0
    %1982 = vmatpush1.bf16.msra.mxu0 0
    %1983 = vmatprep.subr.bf16.mxu0 0
    %1984 = vmatpush1.bf16.msra.mxu0 0
    %1985 = vmatprep.subr.bf16.mxu0 0
    %1986 = vmatpush1.bf16.msra.mxu0 0
    %1987 = vmatprep.subr.bf16.mxu0 0
    %1988 = vmatpush1.bf16.msra.mxu0 0
    %1989 = vmatprep.subr.bf16.mxu0 0
    %1990 = vmatpush1.bf16.msra.mxu0 0
    %1991 = vmatprep.subr.bf16.mxu0 0
    %1992 = vmatpush1.bf16.msra.mxu0 0
    %1993 = vmatprep.subr.bf16.mxu0 0
    %1994 = vmatpush1.bf16.msra.mxu0 0
    %1995 = vmatprep.subr.bf16.mxu0 0
    %1996 = vmatpush1.bf16.msra.mxu0 0
    %1997 = vmatprep.subr.bf16.mxu0 0
    %1998 = vmatpush1.bf16.msra.mxu0 0
    %1999 = vmatprep.mubr.bf16.mxu0 0
    %2000 = vmatmul.mubr.bf16.gmra.mrb[0].mxu0 %v1965
    %v2001 = vpop.f32.mrb[0].mxu0
    %v2002 = vadd.f32 %v1942, %v2001
    %v2003 = vpop.f32.mrb[0].mxu0
    %v2004 = vpop.f32.mrb[0].mxu0
    %v2005 = vpop.f32.mrb[0].mxu0
    %2006 = vdwg.mxu0
    %v2007 = vtanh.pop %v2002
    %v2008 = vpack.c.bf16 %v2007, %v2007
    %v2009 = vld [vmem:[%s12] sm:$0xf]
    %v2010 = vld [vmem:[%s12 + $0x4] sm:$0xf]
    %v2011 = vld [vmem:[%s12 + $0x8] sm:$0xf]
    %v2012 = vld [vmem:[%s12 + $0xc] sm:$0xf]
    %v2013 = vld [vmem:[%s13] sm:$0x1]
    %v2015 = vlaneseq
    %v2016 = vshrl.u32 %v2015, 7
    %v2017 = vsub.s32 0, %v2016
    %v2018 = vrot.slane %v2013, %v2017
    %v2024 = vunpack.c.l.b16 %v2009
    %v2025 = vunpack.c.l.b16 %v2010
    %v2026 = vunpack.c.l.b16 %v2011
    %v2027 = vunpack.c.l.b16 %v2012
    %v2028 = vpack.c.b16 %v2025, %v2024
    %v2029 = vpack.c.b16 %v2027, %v2026
    %v2033 = vsel %vm53, %v2008, 0
    %2035 = vmatprep.subr.bf16.mxu0 0
    %2036 = vmatpush1.bf16.msra.mxu0 %v2028
    %2037 = vmatprep.subr.bf16.mxu0 0
    %2038 = vmatpush1.bf16.msra.mxu0 %v2029
    %2039 = vmatprep.subr.bf16.mxu0 0
    %2040 = vmatpush1.bf16.msra.mxu0 0
    %2041 = vmatprep.subr.bf16.mxu0 0
    %2042 = vmatpush1.bf16.msra.mxu0 0
    %2043 = vmatprep.subr.bf16.mxu0 0
    %2044 = vmatpush1.bf16.msra.mxu0 0
    %2045 = vmatprep.subr.bf16.mxu0 0
    %2046 = vmatpush1.bf16.msra.mxu0 0
    %2047 = vmatprep.subr.bf16.mxu0 0
    %2048 = vmatpush1.bf16.msra.mxu0 0
    %2049 = vmatprep.subr.bf16.mxu0 0
    %2050 = vmatpush1.bf16.msra.mxu0 0
    %2051 = vmatprep.subr.bf16.mxu0 0
    %2052 = vmatpush1.bf16.msra.mxu0 0
    %2053 = vmatprep.subr.bf16.mxu0 0
    %2054 = vmatpush1.bf16.msra.mxu0 0
    %2055 = vmatprep.subr.bf16.mxu0 0
    %2056 = vmatpush1.bf16.msra.mxu0 0
    %2057 = vmatprep.subr.bf16.mxu0 0
    %2058 = vmatpush1.bf16.msra.mxu0 0
    %2059 = vmatprep.subr.bf16.mxu0 0
    %2060 = vmatpush1.bf16.msra.mxu0 0
    %2061 = vmatprep.subr.bf16.mxu0 0
    %2062 = vmatpush1.bf16.msra.mxu0 0
    %2063 = vmatprep.subr.bf16.mxu0 0
    %2064 = vmatpush1.bf16.msra.mxu0 0
    %2065 = vmatprep.subr.bf16.mxu0 0
    %2066 = vmatpush1.bf16.msra.mxu0 0
    %2067 = vmatprep.mubr.bf16.mxu0 0
    %2068 = vmatmul.mubr.bf16.gmra.mrb[0].mxu0 %v2033
    %v2069 = vpop.f32.mrb[0].mxu0
    %v2070 = vadd.f32 %v2018, %v2069
    %v2071 = vpop.f32.mrb[0].mxu0
    %v2072 = vpop.f32.mrb[0].mxu0
    %v2073 = vpop.f32.mrb[0].mxu0
    %2074 = vdwg.mxu0
    %v2075 = vxor.u32 %v2070, 2147483648
    %v2076 = vmul.f32 %v2075, 1.442695
    %v2077 = vpow.pop %v2076
    %v2078 = vadd.f32 %v2077, 1.0
    %v2079 = vrcp.pop %v2078
    %v2080 = vmul.f32 1.0, %v2079
    %2081 = vst [vmem:[#allocation2] sm:$0x3] %v2080
    // Predicated region
    $region58: #{bert_classifier_forward.1} parent=1 // pred_check
      _
    $region59: #{bert_classifier_forward.1} parent=1 // pred_check_branch
      %2083 = sbr.rel (0) target = $region61
    $region60: #{bert_classifier_forward.1} parent=1 // pred_region
      %s2085 = ssub.s32 32, 32
      %2086 = vsyncadd [#allocation3], %s2085
      %s2088 = sshll.u32 [#allocation2], 4
      %s2089 = int_to_ptr.vmem [resolvable:$true] %s2088
      %2091 = dma.vmem_to_hbm [thread:$0]  %s2089, 32, %s14, [#allocation3]
    $region61: #{bert_classifier_forward.1} parent=1 // pred_fallthru
      _
    // Predicated region
    $region62: #{bert_classifier_forward.1} parent=1 // pred_check
      _
    $region63: #{bert_classifier_forward.1} parent=1 // pred_check_branch
      %2093 = sbr.rel (0) target = $region65
    $region64: #{bert_classifier_forward.1} parent=1 // pred_region
      %2094 = dma.done [#allocation3], 32
    $region65: #{bert_classifier_forward.1} parent=1 // pred_fallthru
      _
    %2095 = vsyncpa [#allocation3], 1

</llo_original>
